<compile_context>
chip_gen: v6e
topology: v6e:2x2x1
jax: 0.10.0
libtpu: 0.0.40
codegen_flags: <defaults>
</compile_context>

<pallas_src>
import numpy as np
import jax
import jax.numpy as jnp
from jax.experimental import pallas as pl
from jax.experimental.pallas import tpu as pltpu


def make_mha_kernel(batch: int, seq: int, n_heads: int, head_dim: int):
    d = head_dim
    BH = batch * n_heads

    def mha_kernel(xq_ref, xk_ref, xv_ref,
                   wq_ref, wk_ref, wv_ref,
                   bq_ref, bk_ref, bv_ref,
                   wf_ref, bf_ref, o_ref):
        # xq/xk/xv : (B, S, H)   bf16 activations, un-replicated
        # wq/wk/wv : (nH, H, d)  bf16 per-head column slices of the dense weights
        #                        (1/sqrt(d) pre-folded into wq)
        # bq/bk/bv : (nH, 1, d)  f32  (1/sqrt(d) pre-folded into bq)
        # wf       : (nH, d, H)  bf16 per-head row slices of the output projection
        # bf       : (1, 1, H)   f32
        # o        : (B, S, H)   f32

        # In-kernel replication to a single (B*nH) batch axis. These are
        # broadcasts over *leading* dims + leading-dim-only reshapes: pure tile
        # replication in vregs/VMEM, no extra HBM traffic, no lane/sublane moves.
        def rep_heads(x):        # (B, S, H) -> (B*nH, S, H)
            xb = jnp.broadcast_to(x[:, None], (batch, n_heads) + x.shape[1:])
            return xb.reshape((BH,) + x.shape[1:])

        def rep_batch(w):        # (nH, a, b) -> (B*nH, a, b)
            wb = jnp.broadcast_to(w[None], (batch,) + w.shape)
            return wb.reshape((BH,) + w.shape[1:])

        # Per-(batch, head) projections: bf16 MXU operands, f32 accumulation.
        q = jnp.einsum('nse,ned->nsd', rep_heads(xq_ref[...]), rep_batch(wq_ref[...]),
                       preferred_element_type=jnp.float32) + rep_batch(bq_ref[...])
        k = jnp.einsum('nse,ned->nsd', rep_heads(xk_ref[...]), rep_batch(wk_ref[...]),
                       preferred_element_type=jnp.float32) + rep_batch(bk_ref[...])
        v = jnp.einsum('nse,ned->nsd', rep_heads(xv_ref[...]), rep_batch(wv_ref[...]),
                       preferred_element_type=jnp.float32) + rep_batch(bv_ref[...])

        # Scores + numerically-stable softmax (f32 VPU/EUP math; scale folded in q).
        s = jnp.einsum('nqd,nkd->nqk', q.astype(jnp.bfloat16), k.astype(jnp.bfloat16),
                       preferred_element_type=jnp.float32)            # (B*nH, S, S)
        s = s - jnp.max(s, axis=-1, keepdims=True)
        p = jnp.exp(s)
        p = p * pl.reciprocal(jnp.sum(p, axis=-1, keepdims=True), approx=True)

        ctx = jnp.einsum('nqk,nkd->nqd', p.astype(jnp.bfloat16), v.astype(jnp.bfloat16),
                         preferred_element_type=jnp.float32)          # (B*nH, S, d)

        # fc(concat_h ctx_h) == sum_h ctx_h @ Wf[h*d:(h+1)*d, :]  -> no lane concat.
        part = jnp.einsum('nsd,ndo->nso', ctx.astype(jnp.bfloat16), rep_batch(wf_ref[...]),
                          preferred_element_type=jnp.float32)         # (B*nH, S, H)
        hid = part.shape[-1]
        out = jnp.sum(part.reshape(batch, n_heads, seq, hid), axis=1) + bf_ref[...]
        o_ref[...] = out.astype(o_ref.dtype)

    return mha_kernel


def multihead_attention(query, key, value, params, n_heads):
    """query/key/value: (B, S, H) float32. params: dict (weights in x @ W form)."""
    B, S, H = query.shape
    d = H // n_heads
    inv_scale = 1.0 / float(np.sqrt(d))

    # ---- wrapper-side layout plumbing (plain XLA) -- no zeros, no replication ----
    def per_head_cols(w):                        # (H, H) -> (nH, H, d)
        return w.reshape(H, n_heads, d).transpose(1, 0, 2)

    wq_h = per_head_cols(params["wq"] * inv_scale).astype(jnp.bfloat16)  # fold 1/sqrt(d)
    wk_h = per_head_cols(params["wk"]).astype(jnp.bfloat16)
    wv_h = per_head_cols(params["wv"]).astype(jnp.bfloat16)
    bq_h = (params["bq"][0] * inv_scale).reshape(n_heads, 1, d)          # f32
    bk_h = params["bk"][0].reshape(n_heads, 1, d)
    bv_h = params["bv"][0].reshape(n_heads, 1, d)
    wf_h = params["wf"].reshape(n_heads, d, H).astype(jnp.bfloat16)      # (nH, d, H)
    bf = params["bf"].reshape(1, 1, H)                                   # f32

    xq = query.astype(jnp.bfloat16)
    xk = key.astype(jnp.bfloat16)
    xv = value.astype(jnp.bfloat16)

    args = (xq, xk, xv, wq_h, wk_h, wv_h, bq_h, bk_h, bv_h, wf_h, bf)

    # Advisory cost hint for XLA's scheduler around the tiny custom call.
    flops = (3 * 2 * B * n_heads * S * H * d        # Q/K/V projections
             + 2 * 2 * B * n_heads * S * S * d      # QK^T and PV
             + 2 * B * n_heads * S * d * H)         # output projection
    bytes_accessed = sum(int(np.prod(a.shape)) * a.dtype.itemsize for a in args)
    bytes_accessed += B * S * H * 4                 # f32 output
    cost = pl.CostEstimate(flops=int(flops),
                           transcendentals=int(B * n_heads * S * S),
                           bytes_accessed=int(bytes_accessed))

    kernel = make_mha_kernel(B, S, n_heads, d)
    vmem = pl.BlockSpec(memory_space=pltpu.MemorySpace.VMEM)
    return pl.pallas_call(
        kernel,
        out_shape=jax.ShapeDtypeStruct((B, S, H), jnp.float32),
        in_specs=[vmem] * len(args),
        out_specs=vmem,
        cost_estimate=cost,
    )(*args)


def reference_mha(query, key, value, params, n_heads):
    """Pure-JAX f32 reference mirroring the PyTorch forward (dropout = identity)."""
    B, S, H = query.shape
    d = H // n_heads
    scale = jnp.sqrt(jnp.float32(d))

    Q = query @ params["wq"] + params["bq"][0]
    K = key @ params["wk"] + params["bk"][0]
    V = value @ params["wv"] + params["bv"][0]

    def split(x):
        return x.reshape(B, S, n_heads, d).transpose(0, 2, 1, 3)   # (B, nH, S, d)

    Qh, Kh, Vh = split(Q), split(K), split(V)
    attn = jnp.einsum("bhqd,bhkd->bhqk", Qh, Kh) / scale
    attn = jax.nn.softmax(attn, axis=-1)
    x = jnp.einsum("bhqk,bhkd->bhqd", attn, Vh)
    x = x.transpose(0, 2, 1, 3).reshape(B, S, H)
    return x @ params["wf"] + params["bf"][0]


def init_params(key, hid_dim):
    """Deterministic init. Weights stored pre-transposed so y = x @ W + b,
    matching PyTorch's y = x @ weight.T + bias."""
    ks = jax.random.split(key, 8)
    scale = 1.0 / np.sqrt(hid_dim)

    def lin(kw, kb):
        w = jax.random.uniform(kw, (hid_dim, hid_dim), jnp.float32, -scale, scale)
        b = jax.random.uniform(kb, (1, hid_dim), jnp.float32, -scale, scale)
        return w, b

    wq, bq = lin(ks[0], ks[1])
    wk, bk = lin(ks[2], ks[3])
    wv, bv = lin(ks[4], ks[5])
    wf, bf = lin(ks[6], ks[7])
    return {"wq": wq, "bq": bq, "wk": wk, "bk": bk,
            "wv": wv, "bv": bv, "wf": wf, "bf": bf}


if __name__ == "__main__":
    B, S, H, n_heads = 2, 8, 32, 4   # hid_dim=32, n_heads=4, dropout=0.0 (identity)

    root = jax.random.PRNGKey(0)
    kp, kq, kk, kv = jax.random.split(root, 4)
    params = init_params(kp, H)
    query = jax.random.normal(kq, (B, S, H), jnp.float32)
    key_in = jax.random.normal(kk, (B, S, H), jnp.float32)
    value = jax.random.normal(kv, (B, S, H), jnp.float32)

    out = multihead_attention(query, key_in, value, params, n_heads)
    out = jax.block_until_ready(out)

    ref = reference_mha(query, key_in, value, params, n_heads)
    # Tolerance reflects bf16 MXU operands (f32 accumulation) + the EUP approximate
    # reciprocal in the softmax denominator; expected error is a few 1e-3.
    np.testing.assert_allclose(np.asarray(out), np.asarray(ref), rtol=2e-2, atol=2e-2)

    print("KERNEL_OK")
</pallas_src>

<mosaic_0001>
module attributes {stable_mosaic.version = 11 : i64} {
  func.func @mha_kernel(%arg0: memref<2x8x32xbf16, #tpu.memory_space<vmem>>, %arg1: memref<2x8x32xbf16, #tpu.memory_space<vmem>>, %arg2: memref<2x8x32xbf16, #tpu.memory_space<vmem>>, %arg3: memref<4x32x8xbf16, #tpu.memory_space<vmem>>, %arg4: memref<4x32x8xbf16, #tpu.memory_space<vmem>>, %arg5: memref<4x32x8xbf16, #tpu.memory_space<vmem>>, %arg6: memref<4x1x8xf32, #tpu.memory_space<vmem>>, %arg7: memref<4x1x8xf32, #tpu.memory_space<vmem>>, %arg8: memref<4x1x8xf32, #tpu.memory_space<vmem>>, %arg9: memref<4x8x32xbf16, #tpu.memory_space<vmem>>, %arg10: memref<1x1x32xf32, #tpu.memory_space<vmem>>, %arg11: memref<2x8x32xf32, #tpu.memory_space<vmem>>) attributes {dimension_semantics = [], scalar_prefetch = 0 : i64, scratch_operands = 0 : i64, tpu.core_type = #tpu.core_type<tc>} {
    %c0 = arith.constant 0 : index
    %c0_0 = arith.constant 0 : index
    %c0_1 = arith.constant 0 : index
    %0 = vector.load %arg0[%c0, %c0_0, %c0_1] : memref<2x8x32xbf16, #tpu.memory_space<vmem>>, vector<2x8x32xbf16>
    %1 = vector.shape_cast %0 : vector<2x8x32xbf16> to vector<2x1x8x32xbf16>
    %2 = vector.shape_cast %1 : vector<2x1x8x32xbf16> to vector<2x1x8x32xbf16>
    %3 = vector.broadcast %2 : vector<2x1x8x32xbf16> to vector<2x4x8x32xbf16>
    %4 = vector.shape_cast %3 : vector<2x4x8x32xbf16> to vector<8x8x32xbf16>
    %c0_2 = arith.constant 0 : index
    %c0_3 = arith.constant 0 : index
    %c0_4 = arith.constant 0 : index
    %5 = vector.load %arg3[%c0_2, %c0_3, %c0_4] : memref<4x32x8xbf16, #tpu.memory_space<vmem>>, vector<4x32x8xbf16>
    %6 = vector.shape_cast %5 : vector<4x32x8xbf16> to vector<1x4x32x8xbf16>
    %7 = vector.shape_cast %6 : vector<1x4x32x8xbf16> to vector<1x4x32x8xbf16>
    %8 = vector.broadcast %7 : vector<1x4x32x8xbf16> to vector<2x4x32x8xbf16>
    %9 = vector.shape_cast %8 : vector<2x4x32x8xbf16> to vector<8x32x8xbf16>
    "tpu.trace_start"() <{level = 10 : i32, message = "nse,ned->nsd"}> : () -> ()
    %cst = arith.constant dense<0.000000e+00> : vector<8x8x8xf32>
    %10 = tpu.matmul %4, %9, %cst {dimension_numbers = #tpu.dot_dimension_numbers<[2], [1], [1], [2], [0, 0, 0, 1, 1, 2], [0], [0]>} : vector<8x8x32xbf16>, vector<8x32x8xbf16>, vector<8x8x8xf32> -> vector<8x8x8xf32>
    "tpu.trace_stop"() : () -> ()
    %c0_5 = arith.constant 0 : index
    %c0_6 = arith.constant 0 : index
    %c0_7 = arith.constant 0 : index
    %11 = vector.load %arg6[%c0_5, %c0_6, %c0_7] : memref<4x1x8xf32, #tpu.memory_space<vmem>>, vector<4x1x8xf32>
    %12 = vector.shape_cast %11 : vector<4x1x8xf32> to vector<1x4x1x8xf32>
    %13 = vector.shape_cast %12 : vector<1x4x1x8xf32> to vector<1x4x1x8xf32>
    %14 = vector.broadcast %13 : vector<1x4x1x8xf32> to vector<2x4x1x8xf32>
    %15 = vector.shape_cast %14 : vector<2x4x1x8xf32> to vector<8x1x8xf32>
    %16 = vector.broadcast %15 : vector<8x1x8xf32> to vector<8x8x8xf32>
    %17 = arith.addf %10, %16 : vector<8x8x8xf32>
    %c0_8 = arith.constant 0 : index
    %c0_9 = arith.constant 0 : index
    %c0_10 = arith.constant 0 : index
    %18 = vector.load %arg1[%c0_8, %c0_9, %c0_10] : memref<2x8x32xbf16, #tpu.memory_space<vmem>>, vector<2x8x32xbf16>
    %19 = vector.shape_cast %18 : vector<2x8x32xbf16> to vector<2x1x8x32xbf16>
    %20 = vector.shape_cast %19 : vector<2x1x8x32xbf16> to vector<2x1x8x32xbf16>
    %21 = vector.broadcast %20 : vector<2x1x8x32xbf16> to vector<2x4x8x32xbf16>
    %22 = vector.shape_cast %21 : vector<2x4x8x32xbf16> to vector<8x8x32xbf16>
    %c0_11 = arith.constant 0 : index
    %c0_12 = arith.constant 0 : index
    %c0_13 = arith.constant 0 : index
    %23 = vector.load %arg4[%c0_11, %c0_12, %c0_13] : memref<4x32x8xbf16, #tpu.memory_space<vmem>>, vector<4x32x8xbf16>
    %24 = vector.shape_cast %23 : vector<4x32x8xbf16> to vector<1x4x32x8xbf16>
    %25 = vector.shape_cast %24 : vector<1x4x32x8xbf16> to vector<1x4x32x8xbf16>
    %26 = vector.broadcast %25 : vector<1x4x32x8xbf16> to vector<2x4x32x8xbf16>
    %27 = vector.shape_cast %26 : vector<2x4x32x8xbf16> to vector<8x32x8xbf16>
    "tpu.trace_start"() <{level = 10 : i32, message = "nse,ned->nsd"}> : () -> ()
    %cst_14 = arith.constant dense<0.000000e+00> : vector<8x8x8xf32>
    %28 = tpu.matmul %22, %27, %cst_14 {dimension_numbers = #tpu.dot_dimension_numbers<[2], [1], [1], [2], [0, 0, 0, 1, 1, 2], [0], [0]>} : vector<8x8x32xbf16>, vector<8x32x8xbf16>, vector<8x8x8xf32> -> vector<8x8x8xf32>
    "tpu.trace_stop"() : () -> ()
    %c0_15 = arith.constant 0 : index
    %c0_16 = arith.constant 0 : index
    %c0_17 = arith.constant 0 : index
    %29 = vector.load %arg7[%c0_15, %c0_16, %c0_17] : memref<4x1x8xf32, #tpu.memory_space<vmem>>, vector<4x1x8xf32>
    %30 = vector.shape_cast %29 : vector<4x1x8xf32> to vector<1x4x1x8xf32>
    %31 = vector.shape_cast %30 : vector<1x4x1x8xf32> to vector<1x4x1x8xf32>
    %32 = vector.broadcast %31 : vector<1x4x1x8xf32> to vector<2x4x1x8xf32>
    %33 = vector.shape_cast %32 : vector<2x4x1x8xf32> to vector<8x1x8xf32>
    %34 = vector.broadcast %33 : vector<8x1x8xf32> to vector<8x8x8xf32>
    %35 = arith.addf %28, %34 : vector<8x8x8xf32>
    %c0_18 = arith.constant 0 : index
    %c0_19 = arith.constant 0 : index
    %c0_20 = arith.constant 0 : index
    %36 = vector.load %arg2[%c0_18, %c0_19, %c0_20] : memref<2x8x32xbf16, #tpu.memory_space<vmem>>, vector<2x8x32xbf16>
    %37 = vector.shape_cast %36 : vector<2x8x32xbf16> to vector<2x1x8x32xbf16>
    %38 = vector.shape_cast %37 : vector<2x1x8x32xbf16> to vector<2x1x8x32xbf16>
    %39 = vector.broadcast %38 : vector<2x1x8x32xbf16> to vector<2x4x8x32xbf16>
    %40 = vector.shape_cast %39 : vector<2x4x8x32xbf16> to vector<8x8x32xbf16>
    %c0_21 = arith.constant 0 : index
    %c0_22 = arith.constant 0 : index
    %c0_23 = arith.constant 0 : index
    %41 = vector.load %arg5[%c0_21, %c0_22, %c0_23] : memref<4x32x8xbf16, #tpu.memory_space<vmem>>, vector<4x32x8xbf16>
    %42 = vector.shape_cast %41 : vector<4x32x8xbf16> to vector<1x4x32x8xbf16>
    %43 = vector.shape_cast %42 : vector<1x4x32x8xbf16> to vector<1x4x32x8xbf16>
    %44 = vector.broadcast %43 : vector<1x4x32x8xbf16> to vector<2x4x32x8xbf16>
    %45 = vector.shape_cast %44 : vector<2x4x32x8xbf16> to vector<8x32x8xbf16>
    "tpu.trace_start"() <{level = 10 : i32, message = "nse,ned->nsd"}> : () -> ()
    %cst_24 = arith.constant dense<0.000000e+00> : vector<8x8x8xf32>
    %46 = tpu.matmul %40, %45, %cst_24 {dimension_numbers = #tpu.dot_dimension_numbers<[2], [1], [1], [2], [0, 0, 0, 1, 1, 2], [0], [0]>} : vector<8x8x32xbf16>, vector<8x32x8xbf16>, vector<8x8x8xf32> -> vector<8x8x8xf32>
    "tpu.trace_stop"() : () -> ()
    %c0_25 = arith.constant 0 : index
    %c0_26 = arith.constant 0 : index
    %c0_27 = arith.constant 0 : index
    %47 = vector.load %arg8[%c0_25, %c0_26, %c0_27] : memref<4x1x8xf32, #tpu.memory_space<vmem>>, vector<4x1x8xf32>
    %48 = vector.shape_cast %47 : vector<4x1x8xf32> to vector<1x4x1x8xf32>
    %49 = vector.shape_cast %48 : vector<1x4x1x8xf32> to vector<1x4x1x8xf32>
    %50 = vector.broadcast %49 : vector<1x4x1x8xf32> to vector<2x4x1x8xf32>
    %51 = vector.shape_cast %50 : vector<2x4x1x8xf32> to vector<8x1x8xf32>
    %52 = vector.broadcast %51 : vector<8x1x8xf32> to vector<8x8x8xf32>
    %53 = arith.addf %46, %52 : vector<8x8x8xf32>
    %54 = arith.truncf %17 : vector<8x8x8xf32> to vector<8x8x8xbf16>
    %55 = arith.truncf %35 : vector<8x8x8xf32> to vector<8x8x8xbf16>
    "tpu.trace_start"() <{level = 10 : i32, message = "nqd,nkd->nqk"}> : () -> ()
    %cst_28 = arith.constant dense<0.000000e+00> : vector<8x8x8xf32>
    %56 = tpu.matmul %54, %55, %cst_28 {dimension_numbers = #tpu.dot_dimension_numbers<[2], [2], [1], [1], [0, 0, 0, 1, 1, 1], [0], [0]>} : vector<8x8x8xbf16>, vector<8x8x8xbf16>, vector<8x8x8xf32> -> vector<8x8x8xf32>
    "tpu.trace_stop"() : () -> ()
    %cst_29 = arith.constant dense<0xFF800000> : vector<8x8xf32>
    %57 = vector.multi_reduction <maximumf>, %56, %cst_29 [2] : vector<8x8x8xf32> to vector<8x8xf32>
    %58 = vector.shape_cast %57 : vector<8x8xf32> to vector<8x8x1xf32>
    %59 = vector.broadcast %58 : vector<8x8x1xf32> to vector<8x8x8xf32>
    %60 = arith.subf %56, %59 : vector<8x8x8xf32>
    %61 = math.exp %60 : vector<8x8x8xf32>
    %cst_30 = arith.constant dense<0.000000e+00> : vector<8x8xf32>
    %62 = vector.multi_reduction <add>, %61, %cst_30 [2] : vector<8x8x8xf32> to vector<8x8xf32>
    %63 = vector.shape_cast %62 : vector<8x8xf32> to vector<8x8x1xf32>
    %64 = tpu.reciprocal %63 {approx = true} : vector<8x8x1xf32> -> vector<8x8x1xf32>
    %65 = vector.broadcast %64 : vector<8x8x1xf32> to vector<8x8x8xf32>
    %66 = arith.mulf %61, %65 : vector<8x8x8xf32>
    %67 = arith.truncf %66 : vector<8x8x8xf32> to vector<8x8x8xbf16>
    %68 = arith.truncf %53 : vector<8x8x8xf32> to vector<8x8x8xbf16>
    "tpu.trace_start"() <{level = 10 : i32, message = "nqk,nkd->nqd"}> : () -> ()
    %cst_31 = arith.constant dense<0.000000e+00> : vector<8x8x8xf32>
    %69 = tpu.matmul %67, %68, %cst_31 {dimension_numbers = #tpu.dot_dimension_numbers<[2], [1], [1], [2], [0, 0, 0, 1, 1, 2], [0], [0]>} : vector<8x8x8xbf16>, vector<8x8x8xbf16>, vector<8x8x8xf32> -> vector<8x8x8xf32>
    "tpu.trace_stop"() : () -> ()
    %70 = arith.truncf %69 : vector<8x8x8xf32> to vector<8x8x8xbf16>
    %c0_32 = arith.constant 0 : index
    %c0_33 = arith.constant 0 : index
    %c0_34 = arith.constant 0 : index
    %71 = vector.load %arg9[%c0_32, %c0_33, %c0_34] : memref<4x8x32xbf16, #tpu.memory_space<vmem>>, vector<4x8x32xbf16>
    %72 = vector.shape_cast %71 : vector<4x8x32xbf16> to vector<1x4x8x32xbf16>
    %73 = vector.shape_cast %72 : vector<1x4x8x32xbf16> to vector<1x4x8x32xbf16>
    %74 = vector.broadcast %73 : vector<1x4x8x32xbf16> to vector<2x4x8x32xbf16>
    %75 = vector.shape_cast %74 : vector<2x4x8x32xbf16> to vector<8x8x32xbf16>
    "tpu.trace_start"() <{level = 10 : i32, message = "nsd,ndo->nso"}> : () -> ()
    %cst_35 = arith.constant dense<0.000000e+00> : vector<8x8x32xf32>
    %76 = tpu.matmul %70, %75, %cst_35 {dimension_numbers = #tpu.dot_dimension_numbers<[2], [1], [1], [2], [0, 0, 0, 1, 1, 2], [0], [0]>} : vector<8x8x8xbf16>, vector<8x8x32xbf16>, vector<8x8x32xf32> -> vector<8x8x32xf32>
    "tpu.trace_stop"() : () -> ()
    %77 = vector.shape_cast %76 : vector<8x8x32xf32> to vector<2x4x8x32xf32>
    %cst_36 = arith.constant dense<0.000000e+00> : vector<2x8x32xf32>
    %78 = vector.multi_reduction <add>, %77, %cst_36 [1] : vector<2x4x8x32xf32> to vector<2x8x32xf32>
    %c0_37 = arith.constant 0 : index
    %c0_38 = arith.constant 0 : index
    %c0_39 = arith.constant 0 : index
    %79 = vector.load %arg10[%c0_37, %c0_38, %c0_39] : memref<1x1x32xf32, #tpu.memory_space<vmem>>, vector<1x1x32xf32>
    %80 = vector.broadcast %79 : vector<1x1x32xf32> to vector<2x8x32xf32>
    %81 = arith.addf %78, %80 : vector<2x8x32xf32>
    %c0_40 = arith.constant 0 : index
    %c0_41 = arith.constant 0 : index
    %c0_42 = arith.constant 0 : index
    %82 = vector.load %arg11[%c0_40, %c0_41, %c0_42] : memref<2x8x32xf32, #tpu.memory_space<vmem>>, vector<2x8x32xf32>
    tpu.vector_store %arg11[%c0_40, %c0_41, %c0_42], %81 {strides = array<i32>} : memref<2x8x32xf32, #tpu.memory_space<vmem>>, vector<2x8x32xf32>,
    return
  }
}

</mosaic_0001>

<llo_original>
// kernel: tpu_custom_call.1
$region0: #{tpu_custom_call.1}
  #allocation0 [shape = 'u32[]', space=smem, size = 0x4, offset = 0x4, fixed_abs, tag = 'smem constant byte address 0x4 - core index']
  #allocation1 [shape = 'u32[144,128]{1,0:T(1,128)}', space=vmem, size = 0x12000, scoped, tag = 'internal scratch']
  %s0 = inlined_call_operand.vmem [shape: bf16[2,8,32], index: 0, kind: input, shape index: {}]
  %s1 = inlined_call_operand.vmem [shape: bf16[2,8,32], index: 1, kind: input, shape index: {}]
  %s2 = inlined_call_operand.vmem [shape: bf16[2,8,32], index: 2, kind: input, shape index: {}]
  %s3 = inlined_call_operand.vmem [shape: bf16[4,32,8], index: 3, kind: input, shape index: {}]
  %s4 = inlined_call_operand.vmem [shape: bf16[4,32,8], index: 4, kind: input, shape index: {}]
  %s5 = inlined_call_operand.vmem [shape: bf16[4,32,8], index: 5, kind: input, shape index: {}]
  %s6 = inlined_call_operand.vmem [shape: f32[4,1,8], index: 6, kind: input, shape index: {}]
  %s7 = inlined_call_operand.vmem [shape: f32[4,1,8], index: 7, kind: input, shape index: {}]
  %s8 = inlined_call_operand.vmem [shape: f32[4,1,8], index: 8, kind: input, shape index: {}]
  %s9 = inlined_call_operand.vmem [shape: bf16[4,8,32], index: 9, kind: input, shape index: {}]
  %s10 = inlined_call_operand.vmem [shape: f32[1,1,32], index: 10, kind: input, shape index: {}]
  %s11 = inlined_call_operand.hbm [shape: f32[2,8,32], index: 11, kind: output, shape index: {}]
  %s12 = sld [smem:[#allocation0]]
  $region54: #{tpu_custom_call.1} parent=0
    _
  %s14 = ssub.s32 1, %s12
  %s15 = scalar_select 0, %s14, %s12
  $region1: #{tpu_custom_call.1} parent=0
    #allocation2 [shape = 'u8[8192]{0}', space=vmem, size = 0x2000, scoped, tag = 'output window, operand 0, single buffered']
    #allocation3 [shape = 's32[1]{0}', space=sflag, size = 0x4, scoped, tag = 'scoped memory for tpu_custom_call.1']
    %16 = vsyncpa [#allocation3], 0
    // Predicated region
    $region2: #{tpu_custom_call.1} parent=1 // pred_check
      _
    $region3: #{tpu_custom_call.1} parent=1 // pred_check_branch
      %18 = sbr.rel (0) target = $region5
    $region4: #{tpu_custom_call.1} parent=1 // pred_region
      _
    $region5: #{tpu_custom_call.1} parent=1 // pred_fallthru
      _
    // Predicated region
    $region6: #{tpu_custom_call.1} parent=1 // pred_check
      _
    $region7: #{tpu_custom_call.1} parent=1 // pred_check_branch
      %20 = sbr.rel (0) target = $region9
    $region8: #{tpu_custom_call.1} parent=1 // pred_region
      _
    $region9: #{tpu_custom_call.1} parent=1 // pred_fallthru
      _
    // Predicated region
    $region10: #{tpu_custom_call.1} parent=1 // pred_check
      _
    $region11: #{tpu_custom_call.1} parent=1 // pred_check_branch
      %22 = sbr.rel (0) target = $region13
    $region12: #{tpu_custom_call.1} parent=1 // pred_region
      _
    $region13: #{tpu_custom_call.1} parent=1 // pred_fallthru
      _
    // Predicated region
    $region14: #{tpu_custom_call.1} parent=1 // pred_check
      _
    $region15: #{tpu_custom_call.1} parent=1 // pred_check_branch
      %24 = sbr.rel (0) target = $region17
    $region16: #{tpu_custom_call.1} parent=1 // pred_region
      _
    $region17: #{tpu_custom_call.1} parent=1 // pred_fallthru
      _
    // Predicated region
    $region18: #{tpu_custom_call.1} parent=1 // pred_check
      _
    $region19: #{tpu_custom_call.1} parent=1 // pred_check_branch
      %26 = sbr.rel (0) target = $region21
    $region20: #{tpu_custom_call.1} parent=1 // pred_region
      _
    $region21: #{tpu_custom_call.1} parent=1 // pred_fallthru
      _
    // Predicated region
    $region22: #{tpu_custom_call.1} parent=1 // pred_check
      _
    $region23: #{tpu_custom_call.1} parent=1 // pred_check_branch
      %28 = sbr.rel (0) target = $region25
    $region24: #{tpu_custom_call.1} parent=1 // pred_region
      _
    $region25: #{tpu_custom_call.1} parent=1 // pred_fallthru
      _
    // Predicated region
    $region26: #{tpu_custom_call.1} parent=1 // pred_check
      _
    $region27: #{tpu_custom_call.1} parent=1 // pred_check_branch
      %30 = sbr.rel (0) target = $region29
    $region28: #{tpu_custom_call.1} parent=1 // pred_region
      _
    $region29: #{tpu_custom_call.1} parent=1 // pred_fallthru
      _
    // Predicated region
    $region30: #{tpu_custom_call.1} parent=1 // pred_check
      _
    $region31: #{tpu_custom_call.1} parent=1 // pred_check_branch
      %32 = sbr.rel (0) target = $region33
    $region32: #{tpu_custom_call.1} parent=1 // pred_region
      _
    $region33: #{tpu_custom_call.1} parent=1 // pred_fallthru
      _
    // Predicated region
    $region34: #{tpu_custom_call.1} parent=1 // pred_check
      _
    $region35: #{tpu_custom_call.1} parent=1 // pred_check_branch
      %34 = sbr.rel (0) target = $region37
    $region36: #{tpu_custom_call.1} parent=1 // pred_region
      _
    $region37: #{tpu_custom_call.1} parent=1 // pred_fallthru
      _
    // Predicated region
    $region38: #{tpu_custom_call.1} parent=1 // pred_check
      _
    $region39: #{tpu_custom_call.1} parent=1 // pred_check_branch
      %36 = sbr.rel (0) target = $region41
    $region40: #{tpu_custom_call.1} parent=1 // pred_region
      _
    $region41: #{tpu_custom_call.1} parent=1 // pred_fallthru
      _
    // Predicated region
    $region42: #{tpu_custom_call.1} parent=1 // pred_check
      _
    $region43: #{tpu_custom_call.1} parent=1 // pred_check_branch
      %38 = sbr.rel (0) target = $region45
    $region44: #{tpu_custom_call.1} parent=1 // pred_region
      _
    $region45: #{tpu_custom_call.1} parent=1 // pred_fallthru
      _
    %v40 = vld [vmem:[%s0] sm:$0xf]
    %v41 = vld [vmem:[%s0 + $0x4] sm:$0xf]
    %v42 = vld [vmem:[%s3] sm:$0xf]
    %v43 = vld [vmem:[%s3 + $0x4] sm:$0xf]
    %v44 = vld [vmem:[%s3 + $0x8] sm:$0xf]
    %v45 = vld [vmem:[%s3 + $0xc] sm:$0xf]
    %v46 = vld [vmem:[%s3 + $0x10] sm:$0xf]
    %v47 = vld [vmem:[%s3 + $0x14] sm:$0xf]
    %v48 = vld [vmem:[%s3 + $0x18] sm:$0xf]
    %v49 = vld [vmem:[%s3 + $0x1c] sm:$0xf]
    %v50 = vld [vmem:[%s3 + $0x20] sm:$0xf]
    %v51 = vld [vmem:[%s3 + $0x24] sm:$0xf]
    %v52 = vld [vmem:[%s3 + $0x28] sm:$0xf]
    %v53 = vld [vmem:[%s3 + $0x2c] sm:$0xf]
    %v54 = vld [vmem:[%s3 + $0x30] sm:$0xf]
    %v55 = vld [vmem:[%s3 + $0x34] sm:$0xf]
    %v56 = vld [vmem:[%s3 + $0x38] sm:$0xf]
    %v57 = vld [vmem:[%s3 + $0x3c] sm:$0xf]
    %v58 = vld [vmem:[%s6] sm:$0x1]
    %v59 = vld [vmem:[%s6 + $0x1] sm:$0x1]
    %v60 = vld [vmem:[%s6 + $0x2] sm:$0x1]
    %v61 = vld [vmem:[%s6 + $0x3] sm:$0x1]
    %v66 = vlaneseq
    %v67 = vshrl.u32 %v66, 7
    %v68 = vsub.s32 0, %v67
    %v69 = vrot.slane %v58, %v68
    %v70 = vlaneseq
    %v71 = vshrl.u32 %v70, 7
    %v72 = vsub.s32 0, %v71
    %v73 = vrot.slane %v59, %v72
    %v74 = vlaneseq
    %v75 = vshrl.u32 %v74, 7
    %v76 = vsub.s32 0, %v75
    %v77 = vrot.slane %v60, %v76
    %v78 = vlaneseq
    %v79 = vshrl.u32 %v78, 7
    %v80 = vsub.s32 0, %v79
    %v81 = vrot.slane %v61, %v80
    %v90 = vunpack.c.l.b16 %v42
    %v91 = vunpack.c.l.b16 %v43
    %v92 = vunpack.c.l.b16 %v44
    %v93 = vunpack.c.l.b16 %v45
    %v94 = vpack.c.b16 %v91, %v90
    %v95 = vpack.c.b16 %v93, %v92
    %vm98 = vcmask 261120
    %v100 = vsel %vm98, %v40, 0
    %102 = vmatprep.subr.bf16.mxu0 0
    %103 = vmatpush1.bf16.msra.mxu0 0
    %104 = vmatprep.subr.bf16.mxu0 0
    %105 = vmatpush1.bf16.msra.mxu0 0
    %106 = vmatprep.subr.bf16.mxu0 0
    %107 = vmatpush1.bf16.msra.mxu0 0
    %108 = vmatprep.subr.bf16.mxu0 0
    %109 = vmatpush1.bf16.msra.mxu0 0
    %110 = vmatprep.subr.bf16.mxu0 0
    %111 = vmatpush1.bf16.msra.mxu0 0
    %112 = vmatprep.subr.bf16.mxu0 0
    %113 = vmatpush1.bf16.msra.mxu0 0
    %114 = vmatprep.subr.bf16.mxu0 0
    %115 = vmatpush1.bf16.msra.mxu0 %v95
    %116 = vmatprep.subr.bf16.mxu0 0
    %117 = vmatpush1.bf16.msra.mxu0 %v94
    %118 = vmatprep.subr.bf16.mxu0 0
    %119 = vmatpush2.bf16.msra.mxu0 0
    %120 = vmatprep.subr.bf16.mxu0 0
    %121 = vmatpush2.bf16.msra.mxu0 0
    %122 = vmatprep.subr.bf16.mxu0 0
    %123 = vmatpush2.bf16.msra.mxu0 0
    %124 = vmatprep.subr.bf16.mxu0 0
    %125 = vmatpush2.bf16.msra.mxu0 0
    %126 = vmatprep.subr.bf16.mxu0 0
    %127 = vmatpush2.bf16.msra.mxu0 0
    %128 = vmatprep.subr.bf16.mxu0 0
    %129 = vmatpush2.bf16.msra.mxu0 0
    %130 = vmatprep.subr.bf16.mxu0 0
    %131 = vmatpush2.bf16.msra.mxu0 0
    %132 = vmatprep.subr.bf16.mxu0 0
    %133 = vmatpush2.bf16.msra.mxu0 0
    %134 = vmatprep.mubr.bf16.mxu0 0
    %135 = vmatmul.mubr.bf16.gmra.mxu0 %v100
    %v136 = vpop.f32.mrf.mxu0
    %v137 = vadd.f32 %v69, %v136
    %v138 = vpop.f32.mrf.mxu0
    %v139 = vpop.f32.mrf.mxu0
    %v140 = vpop.f32.mrf.mxu0
    %141 = vdwg.mxu0
    %v146 = vunpack.c.l.b16 %v46
    %v147 = vunpack.c.l.b16 %v47
    %v148 = vunpack.c.l.b16 %v48
    %v149 = vunpack.c.l.b16 %v49
    %v150 = vpack.c.b16 %v147, %v146
    %v151 = vpack.c.b16 %v149, %v148
    %154 = vmatprep.subr.bf16.mxu0 0
    %155 = vmatpush1.bf16.msra.mxu0 0
    %156 = vmatprep.subr.bf16.mxu0 0
    %157 = vmatpush1.bf16.msra.mxu0 0
    %158 = vmatprep.subr.bf16.mxu0 0
    %159 = vmatpush1.bf16.msra.mxu0 0
    %160 = vmatprep.subr.bf16.mxu0 0
    %161 = vmatpush1.bf16.msra.mxu0 0
    %162 = vmatprep.subr.bf16.mxu0 0
    %163 = vmatpush1.bf16.msra.mxu0 0
    %164 = vmatprep.subr.bf16.mxu0 0
    %165 = vmatpush1.bf16.msra.mxu0 0
    %166 = vmatprep.subr.bf16.mxu0 0
    %167 = vmatpush1.bf16.msra.mxu0 %v151
    %168 = vmatprep.subr.bf16.mxu0 0
    %169 = vmatpush1.bf16.msra.mxu0 %v150
    %170 = vmatprep.subr.bf16.mxu0 0
    %171 = vmatpush2.bf16.msra.mxu0 0
    %172 = vmatprep.subr.bf16.mxu0 0
    %173 = vmatpush2.bf16.msra.mxu0 0
    %174 = vmatprep.subr.bf16.mxu0 0
    %175 = vmatpush2.bf16.msra.mxu0 0
    %176 = vmatprep.subr.bf16.mxu0 0
    %177 = vmatpush2.bf16.msra.mxu0 0
    %178 = vmatprep.subr.bf16.mxu0 0
    %179 = vmatpush2.bf16.msra.mxu0 0
    %180 = vmatprep.subr.bf16.mxu0 0
    %181 = vmatpush2.bf16.msra.mxu0 0
    %182 = vmatprep.subr.bf16.mxu0 0
    %183 = vmatpush2.bf16.msra.mxu0 0
    %184 = vmatprep.subr.bf16.mxu0 0
    %185 = vmatpush2.bf16.msra.mxu0 0
    %186 = vmatprep.mubr.bf16.mxu0 0
    %187 = vmatmul.mubr.bf16.gmra.mxu0 %v100
    %v188 = vpop.f32.mrf.mxu0
    %v189 = vadd.f32 %v73, %v188
    %v190 = vpop.f32.mrf.mxu0
    %v191 = vpop.f32.mrf.mxu0
    %v192 = vpop.f32.mrf.mxu0
    %193 = vdwg.mxu0
    %v198 = vunpack.c.l.b16 %v50
    %v199 = vunpack.c.l.b16 %v51
    %v200 = vunpack.c.l.b16 %v52
    %v201 = vunpack.c.l.b16 %v53
    %v202 = vpack.c.b16 %v199, %v198
    %v203 = vpack.c.b16 %v201, %v200
    %206 = vmatprep.subr.bf16.mxu0 0
    %207 = vmatpush1.bf16.msra.mxu0 0
    %208 = vmatprep.subr.bf16.mxu0 0
    %209 = vmatpush1.bf16.msra.mxu0 0
    %210 = vmatprep.subr.bf16.mxu0 0
    %211 = vmatpush1.bf16.msra.mxu0 0
    %212 = vmatprep.subr.bf16.mxu0 0
    %213 = vmatpush1.bf16.msra.mxu0 0
    %214 = vmatprep.subr.bf16.mxu0 0
    %215 = vmatpush1.bf16.msra.mxu0 0
    %216 = vmatprep.subr.bf16.mxu0 0
    %217 = vmatpush1.bf16.msra.mxu0 0
    %218 = vmatprep.subr.bf16.mxu0 0
    %219 = vmatpush1.bf16.msra.mxu0 %v203
    %220 = vmatprep.subr.bf16.mxu0 0
    %221 = vmatpush1.bf16.msra.mxu0 %v202
    %222 = vmatprep.subr.bf16.mxu0 0
    %223 = vmatpush2.bf16.msra.mxu0 0
    %224 = vmatprep.subr.bf16.mxu0 0
    %225 = vmatpush2.bf16.msra.mxu0 0
    %226 = vmatprep.subr.bf16.mxu0 0
    %227 = vmatpush2.bf16.msra.mxu0 0
    %228 = vmatprep.subr.bf16.mxu0 0
    %229 = vmatpush2.bf16.msra.mxu0 0
    %230 = vmatprep.subr.bf16.mxu0 0
    %231 = vmatpush2.bf16.msra.mxu0 0
    %232 = vmatprep.subr.bf16.mxu0 0
    %233 = vmatpush2.bf16.msra.mxu0 0
    %234 = vmatprep.subr.bf16.mxu0 0
    %235 = vmatpush2.bf16.msra.mxu0 0
    %236 = vmatprep.subr.bf16.mxu0 0
    %237 = vmatpush2.bf16.msra.mxu0 0
    %238 = vmatprep.mubr.bf16.mxu0 0
    %239 = vmatmul.mubr.bf16.gmra.mxu0 %v100
    %v240 = vpop.f32.mrf.mxu0
    %v241 = vadd.f32 %v77, %v240
    %v242 = vpop.f32.mrf.mxu0
    %v243 = vpop.f32.mrf.mxu0
    %v244 = vpop.f32.mrf.mxu0
    %245 = vdwg.mxu0
    %v250 = vunpack.c.l.b16 %v54
    %v251 = vunpack.c.l.b16 %v55
    %v252 = vunpack.c.l.b16 %v56
    %v253 = vunpack.c.l.b16 %v57
    %v254 = vpack.c.b16 %v251, %v250
    %v255 = vpack.c.b16 %v253, %v252
    %258 = vmatprep.subr.bf16.mxu0 0
    %259 = vmatpush1.bf16.msra.mxu0 0
    %260 = vmatprep.subr.bf16.mxu0 0
    %261 = vmatpush1.bf16.msra.mxu0 0
    %262 = vmatprep.subr.bf16.mxu0 0
    %263 = vmatpush1.bf16.msra.mxu0 0
    %264 = vmatprep.subr.bf16.mxu0 0
    %265 = vmatpush1.bf16.msra.mxu0 0
    %266 = vmatprep.subr.bf16.mxu0 0
    %267 = vmatpush1.bf16.msra.mxu0 0
    %268 = vmatprep.subr.bf16.mxu0 0
    %269 = vmatpush1.bf16.msra.mxu0 0
    %270 = vmatprep.subr.bf16.mxu0 0
    %271 = vmatpush1.bf16.msra.mxu0 %v255
    %272 = vmatprep.subr.bf16.mxu0 0
    %273 = vmatpush1.bf16.msra.mxu0 %v254
    %274 = vmatprep.subr.bf16.mxu0 0
    %275 = vmatpush2.bf16.msra.mxu0 0
    %276 = vmatprep.subr.bf16.mxu0 0
    %277 = vmatpush2.bf16.msra.mxu0 0
    %278 = vmatprep.subr.bf16.mxu0 0
    %279 = vmatpush2.bf16.msra.mxu0 0
    %280 = vmatprep.subr.bf16.mxu0 0
    %281 = vmatpush2.bf16.msra.mxu0 0
    %282 = vmatprep.subr.bf16.mxu0 0
    %283 = vmatpush2.bf16.msra.mxu0 0
    %284 = vmatprep.subr.bf16.mxu0 0
    %285 = vmatpush2.bf16.msra.mxu0 0
    %286 = vmatprep.subr.bf16.mxu0 0
    %287 = vmatpush2.bf16.msra.mxu0 0
    %288 = vmatprep.subr.bf16.mxu0 0
    %289 = vmatpush2.bf16.msra.mxu0 0
    %290 = vmatprep.mubr.bf16.mxu0 0
    %291 = vmatmul.mubr.bf16.gmra.mxu0 %v100
    %v292 = vpop.f32.mrf.mxu0
    %v293 = vadd.f32 %v81, %v292
    %v294 = vpop.f32.mrf.mxu0
    %v295 = vpop.f32.mrf.mxu0
    %v296 = vpop.f32.mrf.mxu0
    %297 = vdwg.mxu0
    %v299 = vsel %vm98, %v41, 0
    %301 = vmatprep.subr.bf16.mxu0 0
    %302 = vmatpush1.bf16.msra.mxu0 0
    %303 = vmatprep.subr.bf16.mxu0 0
    %304 = vmatpush1.bf16.msra.mxu0 0
    %305 = vmatprep.subr.bf16.mxu0 0
    %306 = vmatpush1.bf16.msra.mxu0 0
    %307 = vmatprep.subr.bf16.mxu0 0
    %308 = vmatpush1.bf16.msra.mxu0 0
    %309 = vmatprep.subr.bf16.mxu0 0
    %310 = vmatpush1.bf16.msra.mxu0 0
    %311 = vmatprep.subr.bf16.mxu0 0
    %312 = vmatpush1.bf16.msra.mxu0 0
    %313 = vmatprep.subr.bf16.mxu0 0
    %314 = vmatpush1.bf16.msra.mxu0 %v95
    %315 = vmatprep.subr.bf16.mxu0 0
    %316 = vmatpush1.bf16.msra.mxu0 %v94
    %317 = vmatprep.subr.bf16.mxu0 0
    %318 = vmatpush2.bf16.msra.mxu0 0
    %319 = vmatprep.subr.bf16.mxu0 0
    %320 = vmatpush2.bf16.msra.mxu0 0
    %321 = vmatprep.subr.bf16.mxu0 0
    %322 = vmatpush2.bf16.msra.mxu0 0
    %323 = vmatprep.subr.bf16.mxu0 0
    %324 = vmatpush2.bf16.msra.mxu0 0
    %325 = vmatprep.subr.bf16.mxu0 0
    %326 = vmatpush2.bf16.msra.mxu0 0
    %327 = vmatprep.subr.bf16.mxu0 0
    %328 = vmatpush2.bf16.msra.mxu0 0
    %329 = vmatprep.subr.bf16.mxu0 0
    %330 = vmatpush2.bf16.msra.mxu0 0
    %331 = vmatprep.subr.bf16.mxu0 0
    %332 = vmatpush2.bf16.msra.mxu0 0
    %333 = vmatprep.mubr.bf16.mxu0 0
    %334 = vmatmul.mubr.bf16.gmra.mxu0 %v299
    %v335 = vpop.f32.mrf.mxu0
    %v336 = vadd.f32 %v69, %v335
    %v337 = vpop.f32.mrf.mxu0
    %v338 = vpop.f32.mrf.mxu0
    %v339 = vpop.f32.mrf.mxu0
    %340 = vdwg.mxu0
    %341 = vmatprep.subr.bf16.mxu0 0
    %342 = vmatpush1.bf16.msra.mxu0 0
    %343 = vmatprep.subr.bf16.mxu0 0
    %344 = vmatpush1.bf16.msra.mxu0 0
    %345 = vmatprep.subr.bf16.mxu0 0
    %346 = vmatpush1.bf16.msra.mxu0 0
    %347 = vmatprep.subr.bf16.mxu0 0
    %348 = vmatpush1.bf16.msra.mxu0 0
    %349 = vmatprep.subr.bf16.mxu0 0
    %350 = vmatpush1.bf16.msra.mxu0 0
    %351 = vmatprep.subr.bf16.mxu0 0
    %352 = vmatpush1.bf16.msra.mxu0 0
    %353 = vmatprep.subr.bf16.mxu0 0
    %354 = vmatpush1.bf16.msra.mxu0 %v151
    %355 = vmatprep.subr.bf16.mxu0 0
    %356 = vmatpush1.bf16.msra.mxu0 %v150
    %357 = vmatprep.subr.bf16.mxu0 0
    %358 = vmatpush2.bf16.msra.mxu0 0
    %359 = vmatprep.subr.bf16.mxu0 0
    %360 = vmatpush2.bf16.msra.mxu0 0
    %361 = vmatprep.subr.bf16.mxu0 0
    %362 = vmatpush2.bf16.msra.mxu0 0
    %363 = vmatprep.subr.bf16.mxu0 0
    %364 = vmatpush2.bf16.msra.mxu0 0
    %365 = vmatprep.subr.bf16.mxu0 0
    %366 = vmatpush2.bf16.msra.mxu0 0
    %367 = vmatprep.subr.bf16.mxu0 0
    %368 = vmatpush2.bf16.msra.mxu0 0
    %369 = vmatprep.subr.bf16.mxu0 0
    %370 = vmatpush2.bf16.msra.mxu0 0
    %371 = vmatprep.subr.bf16.mxu0 0
    %372 = vmatpush2.bf16.msra.mxu0 0
    %373 = vmatprep.mubr.bf16.mxu0 0
    %374 = vmatmul.mubr.bf16.gmra.mxu0 %v299
    %v375 = vpop.f32.mrf.mxu0
    %v376 = vadd.f32 %v73, %v375
    %v377 = vpop.f32.mrf.mxu0
    %v378 = vpop.f32.mrf.mxu0
    %v379 = vpop.f32.mrf.mxu0
    %380 = vdwg.mxu0
    %381 = vmatprep.subr.bf16.mxu0 0
    %382 = vmatpush1.bf16.msra.mxu0 0
    %383 = vmatprep.subr.bf16.mxu0 0
    %384 = vmatpush1.bf16.msra.mxu0 0
    %385 = vmatprep.subr.bf16.mxu0 0
    %386 = vmatpush1.bf16.msra.mxu0 0
    %387 = vmatprep.subr.bf16.mxu0 0
    %388 = vmatpush1.bf16.msra.mxu0 0
    %389 = vmatprep.subr.bf16.mxu0 0
    %390 = vmatpush1.bf16.msra.mxu0 0
    %391 = vmatprep.subr.bf16.mxu0 0
    %392 = vmatpush1.bf16.msra.mxu0 0
    %393 = vmatprep.subr.bf16.mxu0 0
    %394 = vmatpush1.bf16.msra.mxu0 %v203
    %395 = vmatprep.subr.bf16.mxu0 0
    %396 = vmatpush1.bf16.msra.mxu0 %v202
    %397 = vmatprep.subr.bf16.mxu0 0
    %398 = vmatpush2.bf16.msra.mxu0 0
    %399 = vmatprep.subr.bf16.mxu0 0
    %400 = vmatpush2.bf16.msra.mxu0 0
    %401 = vmatprep.subr.bf16.mxu0 0
    %402 = vmatpush2.bf16.msra.mxu0 0
    %403 = vmatprep.subr.bf16.mxu0 0
    %404 = vmatpush2.bf16.msra.mxu0 0
    %405 = vmatprep.subr.bf16.mxu0 0
    %406 = vmatpush2.bf16.msra.mxu0 0
    %407 = vmatprep.subr.bf16.mxu0 0
    %408 = vmatpush2.bf16.msra.mxu0 0
    %409 = vmatprep.subr.bf16.mxu0 0
    %410 = vmatpush2.bf16.msra.mxu0 0
    %411 = vmatprep.subr.bf16.mxu0 0
    %412 = vmatpush2.bf16.msra.mxu0 0
    %413 = vmatprep.mubr.bf16.mxu0 0
    %414 = vmatmul.mubr.bf16.gmra.mxu0 %v299
    %v415 = vpop.f32.mrf.mxu0
    %v416 = vadd.f32 %v77, %v415
    %v417 = vpop.f32.mrf.mxu0
    %v418 = vpop.f32.mrf.mxu0
    %v419 = vpop.f32.mrf.mxu0
    %420 = vdwg.mxu0
    %421 = vmatprep.subr.bf16.mxu0 0
    %422 = vmatpush1.bf16.msra.mxu0 0
    %423 = vmatprep.subr.bf16.mxu0 0
    %424 = vmatpush1.bf16.msra.mxu0 0
    %425 = vmatprep.subr.bf16.mxu0 0
    %426 = vmatpush1.bf16.msra.mxu0 0
    %427 = vmatprep.subr.bf16.mxu0 0
    %428 = vmatpush1.bf16.msra.mxu0 0
    %429 = vmatprep.subr.bf16.mxu0 0
    %430 = vmatpush1.bf16.msra.mxu0 0
    %431 = vmatprep.subr.bf16.mxu0 0
    %432 = vmatpush1.bf16.msra.mxu0 0
    %433 = vmatprep.subr.bf16.mxu0 0
    %434 = vmatpush1.bf16.msra.mxu0 %v255
    %435 = vmatprep.subr.bf16.mxu0 0
    %436 = vmatpush1.bf16.msra.mxu0 %v254
    %437 = vmatprep.subr.bf16.mxu0 0
    %438 = vmatpush2.bf16.msra.mxu0 0
    %439 = vmatprep.subr.bf16.mxu0 0
    %440 = vmatpush2.bf16.msra.mxu0 0
    %441 = vmatprep.subr.bf16.mxu0 0
    %442 = vmatpush2.bf16.msra.mxu0 0
    %443 = vmatprep.subr.bf16.mxu0 0
    %444 = vmatpush2.bf16.msra.mxu0 0
    %445 = vmatprep.subr.bf16.mxu0 0
    %446 = vmatpush2.bf16.msra.mxu0 0
    %447 = vmatprep.subr.bf16.mxu0 0
    %448 = vmatpush2.bf16.msra.mxu0 0
    %449 = vmatprep.subr.bf16.mxu0 0
    %450 = vmatpush2.bf16.msra.mxu0 0
    %451 = vmatprep.subr.bf16.mxu0 0
    %452 = vmatpush2.bf16.msra.mxu0 0
    %453 = vmatprep.mubr.bf16.mxu0 0
    %454 = vmatmul.mubr.bf16.gmra.mxu0 %v299
    %v455 = vpop.f32.mrf.mxu0
    %v456 = vadd.f32 %v81, %v455
    %v457 = vpop.f32.mrf.mxu0
    %v458 = vpop.f32.mrf.mxu0
    %v459 = vpop.f32.mrf.mxu0
    %460 = vdwg.mxu0
    %v461 = vld [vmem:[%s1] sm:$0xf]
    %v462 = vld [vmem:[%s1 + $0x4] sm:$0xf]
    %v463 = vld [vmem:[%s4] sm:$0xf]
    %v464 = vld [vmem:[%s4 + $0x4] sm:$0xf]
    %v465 = vld [vmem:[%s4 + $0x8] sm:$0xf]
    %v466 = vld [vmem:[%s4 + $0xc] sm:$0xf]
    %v467 = vld [vmem:[%s4 + $0x10] sm:$0xf]
    %v468 = vld [vmem:[%s4 + $0x14] sm:$0xf]
    %v469 = vld [vmem:[%s4 + $0x18] sm:$0xf]
    %v470 = vld [vmem:[%s4 + $0x1c] sm:$0xf]
    %v471 = vld [vmem:[%s4 + $0x20] sm:$0xf]
    %v472 = vld [vmem:[%s4 + $0x24] sm:$0xf]
    %v473 = vld [vmem:[%s4 + $0x28] sm:$0xf]
    %v474 = vld [vmem:[%s4 + $0x2c] sm:$0xf]
    %v475 = vld [vmem:[%s4 + $0x30] sm:$0xf]
    %v476 = vld [vmem:[%s4 + $0x34] sm:$0xf]
    %v477 = vld [vmem:[%s4 + $0x38] sm:$0xf]
    %v478 = vld [vmem:[%s4 + $0x3c] sm:$0xf]
    %v479 = vld [vmem:[%s7] sm:$0x1]
    %v480 = vld [vmem:[%s7 + $0x1] sm:$0x1]
    %v481 = vld [vmem:[%s7 + $0x2] sm:$0x1]
    %v482 = vld [vmem:[%s7 + $0x3] sm:$0x1]
    %v487 = vlaneseq
    %v488 = vshrl.u32 %v487, 7
    %v489 = vsub.s32 0, %v488
    %v490 = vrot.slane %v479, %v489
    %v491 = vlaneseq
    %v492 = vshrl.u32 %v491, 7
    %v493 = vsub.s32 0, %v492
    %v494 = vrot.slane %v480, %v493
    %v495 = vlaneseq
    %v496 = vshrl.u32 %v495, 7
    %v497 = vsub.s32 0, %v496
    %v498 = vrot.slane %v481, %v497
    %v499 = vlaneseq
    %v500 = vshrl.u32 %v499, 7
    %v501 = vsub.s32 0, %v500
    %v502 = vrot.slane %v482, %v501
    %v511 = vunpack.c.l.b16 %v463
    %v512 = vunpack.c.l.b16 %v464
    %v513 = vunpack.c.l.b16 %v465
    %v514 = vunpack.c.l.b16 %v466
    %v515 = vpack.c.b16 %v512, %v511
    %v516 = vpack.c.b16 %v514, %v513
    %v520 = vsel %vm98, %v461, 0
    %522 = vmatprep.subr.bf16.mxu0 0
    %523 = vmatpush1.bf16.msra.mxu0 0
    %524 = vmatprep.subr.bf16.mxu0 0
    %525 = vmatpush1.bf16.msra.mxu0 0
    %526 = vmatprep.subr.bf16.mxu0 0
    %527 = vmatpush1.bf16.msra.mxu0 0
    %528 = vmatprep.subr.bf16.mxu0 0
    %529 = vmatpush1.bf16.msra.mxu0 0
    %530 = vmatprep.subr.bf16.mxu0 0
    %531 = vmatpush1.bf16.msra.mxu0 0
    %532 = vmatprep.subr.bf16.mxu0 0
    %533 = vmatpush1.bf16.msra.mxu0 0
    %534 = vmatprep.subr.bf16.mxu0 0
    %535 = vmatpush1.bf16.msra.mxu0 %v516
    %536 = vmatprep.subr.bf16.mxu0 0
    %537 = vmatpush1.bf16.msra.mxu0 %v515
    %538 = vmatprep.subr.bf16.mxu0 0
    %539 = vmatpush2.bf16.msra.mxu0 0
    %540 = vmatprep.subr.bf16.mxu0 0
    %541 = vmatpush2.bf16.msra.mxu0 0
    %542 = vmatprep.subr.bf16.mxu0 0
    %543 = vmatpush2.bf16.msra.mxu0 0
    %544 = vmatprep.subr.bf16.mxu0 0
    %545 = vmatpush2.bf16.msra.mxu0 0
    %546 = vmatprep.subr.bf16.mxu0 0
    %547 = vmatpush2.bf16.msra.mxu0 0
    %548 = vmatprep.subr.bf16.mxu0 0
    %549 = vmatpush2.bf16.msra.mxu0 0
    %550 = vmatprep.subr.bf16.mxu0 0
    %551 = vmatpush2.bf16.msra.mxu0 0
    %552 = vmatprep.subr.bf16.mxu0 0
    %553 = vmatpush2.bf16.msra.mxu0 0
    %554 = vmatprep.mubr.bf16.mxu0 0
    %555 = vmatmul.mubr.bf16.gmra.mxu0 %v520
    %v556 = vpop.f32.mrf.mxu0
    %v557 = vadd.f32 %v490, %v556
    %v558 = vpop.f32.mrf.mxu0
    %v559 = vpop.f32.mrf.mxu0
    %v560 = vpop.f32.mrf.mxu0
    %561 = vdwg.mxu0
    %v566 = vunpack.c.l.b16 %v467
    %v567 = vunpack.c.l.b16 %v468
    %v568 = vunpack.c.l.b16 %v469
    %v569 = vunpack.c.l.b16 %v470
    %v570 = vpack.c.b16 %v567, %v566
    %v571 = vpack.c.b16 %v569, %v568
    %574 = vmatprep.subr.bf16.mxu0 0
    %575 = vmatpush1.bf16.msra.mxu0 0
    %576 = vmatprep.subr.bf16.mxu0 0
    %577 = vmatpush1.bf16.msra.mxu0 0
    %578 = vmatprep.subr.bf16.mxu0 0
    %579 = vmatpush1.bf16.msra.mxu0 0
    %580 = vmatprep.subr.bf16.mxu0 0
    %581 = vmatpush1.bf16.msra.mxu0 0
    %582 = vmatprep.subr.bf16.mxu0 0
    %583 = vmatpush1.bf16.msra.mxu0 0
    %584 = vmatprep.subr.bf16.mxu0 0
    %585 = vmatpush1.bf16.msra.mxu0 0
    %586 = vmatprep.subr.bf16.mxu0 0
    %587 = vmatpush1.bf16.msra.mxu0 %v571
    %588 = vmatprep.subr.bf16.mxu0 0
    %589 = vmatpush1.bf16.msra.mxu0 %v570
    %590 = vmatprep.subr.bf16.mxu0 0
    %591 = vmatpush2.bf16.msra.mxu0 0
    %592 = vmatprep.subr.bf16.mxu0 0
    %593 = vmatpush2.bf16.msra.mxu0 0
    %594 = vmatprep.subr.bf16.mxu0 0
    %595 = vmatpush2.bf16.msra.mxu0 0
    %596 = vmatprep.subr.bf16.mxu0 0
    %597 = vmatpush2.bf16.msra.mxu0 0
    %598 = vmatprep.subr.bf16.mxu0 0
    %599 = vmatpush2.bf16.msra.mxu0 0
    %600 = vmatprep.subr.bf16.mxu0 0
    %601 = vmatpush2.bf16.msra.mxu0 0
    %602 = vmatprep.subr.bf16.mxu0 0
    %603 = vmatpush2.bf16.msra.mxu0 0
    %604 = vmatprep.subr.bf16.mxu0 0
    %605 = vmatpush2.bf16.msra.mxu0 0
    %606 = vmatprep.mubr.bf16.mxu0 0
    %607 = vmatmul.mubr.bf16.gmra.mxu0 %v520
    %v608 = vpop.f32.mrf.mxu0
    %v609 = vadd.f32 %v494, %v608
    %v610 = vpop.f32.mrf.mxu0
    %v611 = vpop.f32.mrf.mxu0
    %v612 = vpop.f32.mrf.mxu0
    %613 = vdwg.mxu0
    %v618 = vunpack.c.l.b16 %v471
    %v619 = vunpack.c.l.b16 %v472
    %v620 = vunpack.c.l.b16 %v473
    %v621 = vunpack.c.l.b16 %v474
    %v622 = vpack.c.b16 %v619, %v618
    %v623 = vpack.c.b16 %v621, %v620
    %626 = vmatprep.subr.bf16.mxu0 0
    %627 = vmatpush1.bf16.msra.mxu0 0
    %628 = vmatprep.subr.bf16.mxu0 0
    %629 = vmatpush1.bf16.msra.mxu0 0
    %630 = vmatprep.subr.bf16.mxu0 0
    %631 = vmatpush1.bf16.msra.mxu0 0
    %632 = vmatprep.subr.bf16.mxu0 0
    %633 = vmatpush1.bf16.msra.mxu0 0
    %634 = vmatprep.subr.bf16.mxu0 0
    %635 = vmatpush1.bf16.msra.mxu0 0
    %636 = vmatprep.subr.bf16.mxu0 0
    %637 = vmatpush1.bf16.msra.mxu0 0
    %638 = vmatprep.subr.bf16.mxu0 0
    %639 = vmatpush1.bf16.msra.mxu0 %v623
    %640 = vmatprep.subr.bf16.mxu0 0
    %641 = vmatpush1.bf16.msra.mxu0 %v622
    %642 = vmatprep.subr.bf16.mxu0 0
    %643 = vmatpush2.bf16.msra.mxu0 0
    %644 = vmatprep.subr.bf16.mxu0 0
    %645 = vmatpush2.bf16.msra.mxu0 0
    %646 = vmatprep.subr.bf16.mxu0 0
    %647 = vmatpush2.bf16.msra.mxu0 0
    %648 = vmatprep.subr.bf16.mxu0 0
    %649 = vmatpush2.bf16.msra.mxu0 0
    %650 = vmatprep.subr.bf16.mxu0 0
    %651 = vmatpush2.bf16.msra.mxu0 0
    %652 = vmatprep.subr.bf16.mxu0 0
    %653 = vmatpush2.bf16.msra.mxu0 0
    %654 = vmatprep.subr.bf16.mxu0 0
    %655 = vmatpush2.bf16.msra.mxu0 0
    %656 = vmatprep.subr.bf16.mxu0 0
    %657 = vmatpush2.bf16.msra.mxu0 0
    %658 = vmatprep.mubr.bf16.mxu0 0
    %659 = vmatmul.mubr.bf16.gmra.mxu0 %v520
    %v660 = vpop.f32.mrf.mxu0
    %v661 = vadd.f32 %v498, %v660
    %v662 = vpop.f32.mrf.mxu0
    %v663 = vpop.f32.mrf.mxu0
    %v664 = vpop.f32.mrf.mxu0
    %665 = vdwg.mxu0
    %v670 = vunpack.c.l.b16 %v475
    %v671 = vunpack.c.l.b16 %v476
    %v672 = vunpack.c.l.b16 %v477
    %v673 = vunpack.c.l.b16 %v478
    %v674 = vpack.c.b16 %v671, %v670
    %v675 = vpack.c.b16 %v673, %v672
    %678 = vmatprep.subr.bf16.mxu0 0
    %679 = vmatpush1.bf16.msra.mxu0 0
    %680 = vmatprep.subr.bf16.mxu0 0
    %681 = vmatpush1.bf16.msra.mxu0 0
    %682 = vmatprep.subr.bf16.mxu0 0
    %683 = vmatpush1.bf16.msra.mxu0 0
    %684 = vmatprep.subr.bf16.mxu0 0
    %685 = vmatpush1.bf16.msra.mxu0 0
    %686 = vmatprep.subr.bf16.mxu0 0
    %687 = vmatpush1.bf16.msra.mxu0 0
    %688 = vmatprep.subr.bf16.mxu0 0
    %689 = vmatpush1.bf16.msra.mxu0 0
    %690 = vmatprep.subr.bf16.mxu0 0
    %691 = vmatpush1.bf16.msra.mxu0 %v675
    %692 = vmatprep.subr.bf16.mxu0 0
    %693 = vmatpush1.bf16.msra.mxu0 %v674
    %694 = vmatprep.subr.bf16.mxu0 0
    %695 = vmatpush2.bf16.msra.mxu0 0
    %696 = vmatprep.subr.bf16.mxu0 0
    %697 = vmatpush2.bf16.msra.mxu0 0
    %698 = vmatprep.subr.bf16.mxu0 0
    %699 = vmatpush2.bf16.msra.mxu0 0
    %700 = vmatprep.subr.bf16.mxu0 0
    %701 = vmatpush2.bf16.msra.mxu0 0
    %702 = vmatprep.subr.bf16.mxu0 0
    %703 = vmatpush2.bf16.msra.mxu0 0
    %704 = vmatprep.subr.bf16.mxu0 0
    %705 = vmatpush2.bf16.msra.mxu0 0
    %706 = vmatprep.subr.bf16.mxu0 0
    %707 = vmatpush2.bf16.msra.mxu0 0
    %708 = vmatprep.subr.bf16.mxu0 0
    %709 = vmatpush2.bf16.msra.mxu0 0
    %710 = vmatprep.mubr.bf16.mxu0 0
    %711 = vmatmul.mubr.bf16.gmra.mxu0 %v520
    %v712 = vpop.f32.mrf.mxu0
    %v713 = vadd.f32 %v502, %v712
    %v714 = vpop.f32.mrf.mxu0
    %v715 = vpop.f32.mrf.mxu0
    %v716 = vpop.f32.mrf.mxu0
    %717 = vdwg.mxu0
    %v719 = vsel %vm98, %v462, 0
    %721 = vmatprep.subr.bf16.mxu0 0
    %722 = vmatpush1.bf16.msra.mxu0 0
    %723 = vmatprep.subr.bf16.mxu0 0
    %724 = vmatpush1.bf16.msra.mxu0 0
    %725 = vmatprep.subr.bf16.mxu0 0
    %726 = vmatpush1.bf16.msra.mxu0 0
    %727 = vmatprep.subr.bf16.mxu0 0
    %728 = vmatpush1.bf16.msra.mxu0 0
    %729 = vmatprep.subr.bf16.mxu0 0
    %730 = vmatpush1.bf16.msra.mxu0 0
    %731 = vmatprep.subr.bf16.mxu0 0
    %732 = vmatpush1.bf16.msra.mxu0 0
    %733 = vmatprep.subr.bf16.mxu0 0
    %734 = vmatpush1.bf16.msra.mxu0 %v516
    %735 = vmatprep.subr.bf16.mxu0 0
    %736 = vmatpush1.bf16.msra.mxu0 %v515
    %737 = vmatprep.subr.bf16.mxu0 0
    %738 = vmatpush2.bf16.msra.mxu0 0
    %739 = vmatprep.subr.bf16.mxu0 0
    %740 = vmatpush2.bf16.msra.mxu0 0
    %741 = vmatprep.subr.bf16.mxu0 0
    %742 = vmatpush2.bf16.msra.mxu0 0
    %743 = vmatprep.subr.bf16.mxu0 0
    %744 = vmatpush2.bf16.msra.mxu0 0
    %745 = vmatprep.subr.bf16.mxu0 0
    %746 = vmatpush2.bf16.msra.mxu0 0
    %747 = vmatprep.subr.bf16.mxu0 0
    %748 = vmatpush2.bf16.msra.mxu0 0
    %749 = vmatprep.subr.bf16.mxu0 0
    %750 = vmatpush2.bf16.msra.mxu0 0
    %751 = vmatprep.subr.bf16.mxu0 0
    %752 = vmatpush2.bf16.msra.mxu0 0
    %753 = vmatprep.mubr.bf16.mxu0 0
    %754 = vmatmul.mubr.bf16.gmra.mxu0 %v719
    %v755 = vpop.f32.mrf.mxu0
    %v756 = vadd.f32 %v490, %v755
    %v757 = vpop.f32.mrf.mxu0
    %v758 = vpop.f32.mrf.mxu0
    %v759 = vpop.f32.mrf.mxu0
    %760 = vdwg.mxu0
    %761 = vmatprep.subr.bf16.mxu0 0
    %762 = vmatpush1.bf16.msra.mxu0 0
    %763 = vmatprep.subr.bf16.mxu0 0
    %764 = vmatpush1.bf16.msra.mxu0 0
    %765 = vmatprep.subr.bf16.mxu0 0
    %766 = vmatpush1.bf16.msra.mxu0 0
    %767 = vmatprep.subr.bf16.mxu0 0
    %768 = vmatpush1.bf16.msra.mxu0 0
    %769 = vmatprep.subr.bf16.mxu0 0
    %770 = vmatpush1.bf16.msra.mxu0 0
    %771 = vmatprep.subr.bf16.mxu0 0
    %772 = vmatpush1.bf16.msra.mxu0 0
    %773 = vmatprep.subr.bf16.mxu0 0
    %774 = vmatpush1.bf16.msra.mxu0 %v571
    %775 = vmatprep.subr.bf16.mxu0 0
    %776 = vmatpush1.bf16.msra.mxu0 %v570
    %777 = vmatprep.subr.bf16.mxu0 0
    %778 = vmatpush2.bf16.msra.mxu0 0
    %779 = vmatprep.subr.bf16.mxu0 0
    %780 = vmatpush2.bf16.msra.mxu0 0
    %781 = vmatprep.subr.bf16.mxu0 0
    %782 = vmatpush2.bf16.msra.mxu0 0
    %783 = vmatprep.subr.bf16.mxu0 0
    %784 = vmatpush2.bf16.msra.mxu0 0
    %785 = vmatprep.subr.bf16.mxu0 0
    %786 = vmatpush2.bf16.msra.mxu0 0
    %787 = vmatprep.subr.bf16.mxu0 0
    %788 = vmatpush2.bf16.msra.mxu0 0
    %789 = vmatprep.subr.bf16.mxu0 0
    %790 = vmatpush2.bf16.msra.mxu0 0
    %791 = vmatprep.subr.bf16.mxu0 0
    %792 = vmatpush2.bf16.msra.mxu0 0
    %793 = vmatprep.mubr.bf16.mxu0 0
    %794 = vmatmul.mubr.bf16.gmra.mxu0 %v719
    %v795 = vpop.f32.mrf.mxu0
    %v796 = vadd.f32 %v494, %v795
    %v797 = vpop.f32.mrf.mxu0
    %v798 = vpop.f32.mrf.mxu0
    %v799 = vpop.f32.mrf.mxu0
    %800 = vdwg.mxu0
    %801 = vmatprep.subr.bf16.mxu0 0
    %802 = vmatpush1.bf16.msra.mxu0 0
    %803 = vmatprep.subr.bf16.mxu0 0
    %804 = vmatpush1.bf16.msra.mxu0 0
    %805 = vmatprep.subr.bf16.mxu0 0
    %806 = vmatpush1.bf16.msra.mxu0 0
    %807 = vmatprep.subr.bf16.mxu0 0
    %808 = vmatpush1.bf16.msra.mxu0 0
    %809 = vmatprep.subr.bf16.mxu0 0
    %810 = vmatpush1.bf16.msra.mxu0 0
    %811 = vmatprep.subr.bf16.mxu0 0
    %812 = vmatpush1.bf16.msra.mxu0 0
    %813 = vmatprep.subr.bf16.mxu0 0
    %814 = vmatpush1.bf16.msra.mxu0 %v623
    %815 = vmatprep.subr.bf16.mxu0 0
    %816 = vmatpush1.bf16.msra.mxu0 %v622
    %817 = vmatprep.subr.bf16.mxu0 0
    %818 = vmatpush2.bf16.msra.mxu0 0
    %819 = vmatprep.subr.bf16.mxu0 0
    %820 = vmatpush2.bf16.msra.mxu0 0
    %821 = vmatprep.subr.bf16.mxu0 0
    %822 = vmatpush2.bf16.msra.mxu0 0
    %823 = vmatprep.subr.bf16.mxu0 0
    %824 = vmatpush2.bf16.msra.mxu0 0
    %825 = vmatprep.subr.bf16.mxu0 0
    %826 = vmatpush2.bf16.msra.mxu0 0
    %827 = vmatprep.subr.bf16.mxu0 0
    %828 = vmatpush2.bf16.msra.mxu0 0
    %829 = vmatprep.subr.bf16.mxu0 0
    %830 = vmatpush2.bf16.msra.mxu0 0
    %831 = vmatprep.subr.bf16.mxu0 0
    %832 = vmatpush2.bf16.msra.mxu0 0
    %833 = vmatprep.mubr.bf16.mxu0 0
    %834 = vmatmul.mubr.bf16.gmra.mxu0 %v719
    %v835 = vpop.f32.mrf.mxu0
    %v836 = vadd.f32 %v498, %v835
    %v837 = vpop.f32.mrf.mxu0
    %v838 = vpop.f32.mrf.mxu0
    %v839 = vpop.f32.mrf.mxu0
    %840 = vdwg.mxu0
    %841 = vmatprep.subr.bf16.mxu0 0
    %842 = vmatpush1.bf16.msra.mxu0 0
    %843 = vmatprep.subr.bf16.mxu0 0
    %844 = vmatpush1.bf16.msra.mxu0 0
    %845 = vmatprep.subr.bf16.mxu0 0
    %846 = vmatpush1.bf16.msra.mxu0 0
    %847 = vmatprep.subr.bf16.mxu0 0
    %848 = vmatpush1.bf16.msra.mxu0 0
    %849 = vmatprep.subr.bf16.mxu0 0
    %850 = vmatpush1.bf16.msra.mxu0 0
    %851 = vmatprep.subr.bf16.mxu0 0
    %852 = vmatpush1.bf16.msra.mxu0 0
    %853 = vmatprep.subr.bf16.mxu0 0
    %854 = vmatpush1.bf16.msra.mxu0 %v675
    %855 = vmatprep.subr.bf16.mxu0 0
    %856 = vmatpush1.bf16.msra.mxu0 %v674
    %857 = vmatprep.subr.bf16.mxu0 0
    %858 = vmatpush2.bf16.msra.mxu0 0
    %859 = vmatprep.subr.bf16.mxu0 0
    %860 = vmatpush2.bf16.msra.mxu0 0
    %861 = vmatprep.subr.bf16.mxu0 0
    %862 = vmatpush2.bf16.msra.mxu0 0
    %863 = vmatprep.subr.bf16.mxu0 0
    %864 = vmatpush2.bf16.msra.mxu0 0
    %865 = vmatprep.subr.bf16.mxu0 0
    %866 = vmatpush2.bf16.msra.mxu0 0
    %867 = vmatprep.subr.bf16.mxu0 0
    %868 = vmatpush2.bf16.msra.mxu0 0
    %869 = vmatprep.subr.bf16.mxu0 0
    %870 = vmatpush2.bf16.msra.mxu0 0
    %871 = vmatprep.subr.bf16.mxu0 0
    %872 = vmatpush2.bf16.msra.mxu0 0
    %873 = vmatprep.mubr.bf16.mxu0 0
    %874 = vmatmul.mubr.bf16.gmra.mxu0 %v719
    %v875 = vpop.f32.mrf.mxu0
    %v876 = vadd.f32 %v502, %v875
    %v877 = vpop.f32.mrf.mxu0
    %v878 = vpop.f32.mrf.mxu0
    %v879 = vpop.f32.mrf.mxu0
    %880 = vdwg.mxu0
    %v881 = vld [vmem:[%s2] sm:$0xf]
    %v882 = vld [vmem:[%s2 + $0x4] sm:$0xf]
    %v883 = vld [vmem:[%s5] sm:$0xf]
    %v884 = vld [vmem:[%s5 + $0x4] sm:$0xf]
    %v885 = vld [vmem:[%s5 + $0x8] sm:$0xf]
    %v886 = vld [vmem:[%s5 + $0xc] sm:$0xf]
    %v887 = vld [vmem:[%s5 + $0x10] sm:$0xf]
    %v888 = vld [vmem:[%s5 + $0x14] sm:$0xf]
    %v889 = vld [vmem:[%s5 + $0x18] sm:$0xf]
    %v890 = vld [vmem:[%s5 + $0x1c] sm:$0xf]
    %v891 = vld [vmem:[%s5 + $0x20] sm:$0xf]
    %v892 = vld [vmem:[%s5 + $0x24] sm:$0xf]
    %v893 = vld [vmem:[%s5 + $0x28] sm:$0xf]
    %v894 = vld [vmem:[%s5 + $0x2c] sm:$0xf]
    %v895 = vld [vmem:[%s5 + $0x30] sm:$0xf]
    %v896 = vld [vmem:[%s5 + $0x34] sm:$0xf]
    %v897 = vld [vmem:[%s5 + $0x38] sm:$0xf]
    %v898 = vld [vmem:[%s5 + $0x3c] sm:$0xf]
    %v899 = vld [vmem:[%s8] sm:$0x1]
    %v900 = vld [vmem:[%s8 + $0x1] sm:$0x1]
    %v901 = vld [vmem:[%s8 + $0x2] sm:$0x1]
    %v902 = vld [vmem:[%s8 + $0x3] sm:$0x1]
    %v907 = vlaneseq
    %v908 = vshrl.u32 %v907, 7
    %v909 = vsub.s32 0, %v908
    %v910 = vrot.slane %v899, %v909
    %v911 = vlaneseq
    %v912 = vshrl.u32 %v911, 7
    %v913 = vsub.s32 0, %v912
    %v914 = vrot.slane %v900, %v913
    %v915 = vlaneseq
    %v916 = vshrl.u32 %v915, 7
    %v917 = vsub.s32 0, %v916
    %v918 = vrot.slane %v901, %v917
    %v919 = vlaneseq
    %v920 = vshrl.u32 %v919, 7
    %v921 = vsub.s32 0, %v920
    %v922 = vrot.slane %v902, %v921
    %v931 = vunpack.c.l.b16 %v883
    %v932 = vunpack.c.l.b16 %v884
    %v933 = vunpack.c.l.b16 %v885
    %v934 = vunpack.c.l.b16 %v886
    %v935 = vpack.c.b16 %v932, %v931
    %v936 = vpack.c.b16 %v934, %v933
    %v940 = vsel %vm98, %v881, 0
    %942 = vmatprep.subr.bf16.mxu0 0
    %943 = vmatpush1.bf16.msra.mxu0 0
    %944 = vmatprep.subr.bf16.mxu0 0
    %945 = vmatpush1.bf16.msra.mxu0 0
    %946 = vmatprep.subr.bf16.mxu0 0
    %947 = vmatpush1.bf16.msra.mxu0 0
    %948 = vmatprep.subr.bf16.mxu0 0
    %949 = vmatpush1.bf16.msra.mxu0 0
    %950 = vmatprep.subr.bf16.mxu0 0
    %951 = vmatpush1.bf16.msra.mxu0 0
    %952 = vmatprep.subr.bf16.mxu0 0
    %953 = vmatpush1.bf16.msra.mxu0 0
    %954 = vmatprep.subr.bf16.mxu0 0
    %955 = vmatpush1.bf16.msra.mxu0 %v936
    %956 = vmatprep.subr.bf16.mxu0 0
    %957 = vmatpush1.bf16.msra.mxu0 %v935
    %958 = vmatprep.subr.bf16.mxu0 0
    %959 = vmatpush2.bf16.msra.mxu0 0
    %960 = vmatprep.subr.bf16.mxu0 0
    %961 = vmatpush2.bf16.msra.mxu0 0
    %962 = vmatprep.subr.bf16.mxu0 0
    %963 = vmatpush2.bf16.msra.mxu0 0
    %964 = vmatprep.subr.bf16.mxu0 0
    %965 = vmatpush2.bf16.msra.mxu0 0
    %966 = vmatprep.subr.bf16.mxu0 0
    %967 = vmatpush2.bf16.msra.mxu0 0
    %968 = vmatprep.subr.bf16.mxu0 0
    %969 = vmatpush2.bf16.msra.mxu0 0
    %970 = vmatprep.subr.bf16.mxu0 0
    %971 = vmatpush2.bf16.msra.mxu0 0
    %972 = vmatprep.subr.bf16.mxu0 0
    %973 = vmatpush2.bf16.msra.mxu0 0
    %974 = vmatprep.mubr.bf16.mxu0 0
    %975 = vmatmul.mubr.bf16.gmra.mxu0 %v940
    %v976 = vpop.f32.mrf.mxu0
    %v977 = vadd.f32 %v910, %v976
    %v978 = vpop.f32.mrf.mxu0
    %v979 = vpop.f32.mrf.mxu0
    %v980 = vpop.f32.mrf.mxu0
    %981 = vdwg.mxu0
    %v986 = vunpack.c.l.b16 %v887
    %v987 = vunpack.c.l.b16 %v888
    %v988 = vunpack.c.l.b16 %v889
    %v989 = vunpack.c.l.b16 %v890
    %v990 = vpack.c.b16 %v987, %v986
    %v991 = vpack.c.b16 %v989, %v988
    %994 = vmatprep.subr.bf16.mxu0 0
    %995 = vmatpush1.bf16.msra.mxu0 0
    %996 = vmatprep.subr.bf16.mxu0 0
    %997 = vmatpush1.bf16.msra.mxu0 0
    %998 = vmatprep.subr.bf16.mxu0 0
    %999 = vmatpush1.bf16.msra.mxu0 0
    %1000 = vmatprep.subr.bf16.mxu0 0
    %1001 = vmatpush1.bf16.msra.mxu0 0
    %1002 = vmatprep.subr.bf16.mxu0 0
    %1003 = vmatpush1.bf16.msra.mxu0 0
    %1004 = vmatprep.subr.bf16.mxu0 0
    %1005 = vmatpush1.bf16.msra.mxu0 0
    %1006 = vmatprep.subr.bf16.mxu0 0
    %1007 = vmatpush1.bf16.msra.mxu0 %v991
    %1008 = vmatprep.subr.bf16.mxu0 0
    %1009 = vmatpush1.bf16.msra.mxu0 %v990
    %1010 = vmatprep.subr.bf16.mxu0 0
    %1011 = vmatpush2.bf16.msra.mxu0 0
    %1012 = vmatprep.subr.bf16.mxu0 0
    %1013 = vmatpush2.bf16.msra.mxu0 0
    %1014 = vmatprep.subr.bf16.mxu0 0
    %1015 = vmatpush2.bf16.msra.mxu0 0
    %1016 = vmatprep.subr.bf16.mxu0 0
    %1017 = vmatpush2.bf16.msra.mxu0 0
    %1018 = vmatprep.subr.bf16.mxu0 0
    %1019 = vmatpush2.bf16.msra.mxu0 0
    %1020 = vmatprep.subr.bf16.mxu0 0
    %1021 = vmatpush2.bf16.msra.mxu0 0
    %1022 = vmatprep.subr.bf16.mxu0 0
    %1023 = vmatpush2.bf16.msra.mxu0 0
    %1024 = vmatprep.subr.bf16.mxu0 0
    %1025 = vmatpush2.bf16.msra.mxu0 0
    %1026 = vmatprep.mubr.bf16.mxu0 0
    %1027 = vmatmul.mubr.bf16.gmra.mxu0 %v940
    %v1028 = vpop.f32.mrf.mxu0
    %v1029 = vadd.f32 %v914, %v1028
    %v1030 = vpop.f32.mrf.mxu0
    %v1031 = vpop.f32.mrf.mxu0
    %v1032 = vpop.f32.mrf.mxu0
    %1033 = vdwg.mxu0
    %v1038 = vunpack.c.l.b16 %v891
    %v1039 = vunpack.c.l.b16 %v892
    %v1040 = vunpack.c.l.b16 %v893
    %v1041 = vunpack.c.l.b16 %v894
    %v1042 = vpack.c.b16 %v1039, %v1038
    %v1043 = vpack.c.b16 %v1041, %v1040
    %1046 = vmatprep.subr.bf16.mxu0 0
    %1047 = vmatpush1.bf16.msra.mxu0 0
    %1048 = vmatprep.subr.bf16.mxu0 0
    %1049 = vmatpush1.bf16.msra.mxu0 0
    %1050 = vmatprep.subr.bf16.mxu0 0
    %1051 = vmatpush1.bf16.msra.mxu0 0
    %1052 = vmatprep.subr.bf16.mxu0 0
    %1053 = vmatpush1.bf16.msra.mxu0 0
    %1054 = vmatprep.subr.bf16.mxu0 0
    %1055 = vmatpush1.bf16.msra.mxu0 0
    %1056 = vmatprep.subr.bf16.mxu0 0
    %1057 = vmatpush1.bf16.msra.mxu0 0
    %1058 = vmatprep.subr.bf16.mxu0 0
    %1059 = vmatpush1.bf16.msra.mxu0 %v1043
    %1060 = vmatprep.subr.bf16.mxu0 0
    %1061 = vmatpush1.bf16.msra.mxu0 %v1042
    %1062 = vmatprep.subr.bf16.mxu0 0
    %1063 = vmatpush2.bf16.msra.mxu0 0
    %1064 = vmatprep.subr.bf16.mxu0 0
    %1065 = vmatpush2.bf16.msra.mxu0 0
    %1066 = vmatprep.subr.bf16.mxu0 0
    %1067 = vmatpush2.bf16.msra.mxu0 0
    %1068 = vmatprep.subr.bf16.mxu0 0
    %1069 = vmatpush2.bf16.msra.mxu0 0
    %1070 = vmatprep.subr.bf16.mxu0 0
    %1071 = vmatpush2.bf16.msra.mxu0 0
    %1072 = vmatprep.subr.bf16.mxu0 0
    %1073 = vmatpush2.bf16.msra.mxu0 0
    %1074 = vmatprep.subr.bf16.mxu0 0
    %1075 = vmatpush2.bf16.msra.mxu0 0
    %1076 = vmatprep.subr.bf16.mxu0 0
    %1077 = vmatpush2.bf16.msra.mxu0 0
    %1078 = vmatprep.mubr.bf16.mxu0 0
    %1079 = vmatmul.mubr.bf16.gmra.mxu0 %v940
    %v1080 = vpop.f32.mrf.mxu0
    %v1081 = vadd.f32 %v918, %v1080
    %v1082 = vpop.f32.mrf.mxu0
    %v1083 = vpop.f32.mrf.mxu0
    %v1084 = vpop.f32.mrf.mxu0
    %1085 = vdwg.mxu0
    %v1090 = vunpack.c.l.b16 %v895
    %v1091 = vunpack.c.l.b16 %v896
    %v1092 = vunpack.c.l.b16 %v897
    %v1093 = vunpack.c.l.b16 %v898
    %v1094 = vpack.c.b16 %v1091, %v1090
    %v1095 = vpack.c.b16 %v1093, %v1092
    %1098 = vmatprep.subr.bf16.mxu0 0
    %1099 = vmatpush1.bf16.msra.mxu0 0
    %1100 = vmatprep.subr.bf16.mxu0 0
    %1101 = vmatpush1.bf16.msra.mxu0 0
    %1102 = vmatprep.subr.bf16.mxu0 0
    %1103 = vmatpush1.bf16.msra.mxu0 0
    %1104 = vmatprep.subr.bf16.mxu0 0
    %1105 = vmatpush1.bf16.msra.mxu0 0
    %1106 = vmatprep.subr.bf16.mxu0 0
    %1107 = vmatpush1.bf16.msra.mxu0 0
    %1108 = vmatprep.subr.bf16.mxu0 0
    %1109 = vmatpush1.bf16.msra.mxu0 0
    %1110 = vmatprep.subr.bf16.mxu0 0
    %1111 = vmatpush1.bf16.msra.mxu0 %v1095
    %1112 = vmatprep.subr.bf16.mxu0 0
    %1113 = vmatpush1.bf16.msra.mxu0 %v1094
    %1114 = vmatprep.subr.bf16.mxu0 0
    %1115 = vmatpush2.bf16.msra.mxu0 0
    %1116 = vmatprep.subr.bf16.mxu0 0
    %1117 = vmatpush2.bf16.msra.mxu0 0
    %1118 = vmatprep.subr.bf16.mxu0 0
    %1119 = vmatpush2.bf16.msra.mxu0 0
    %1120 = vmatprep.subr.bf16.mxu0 0
    %1121 = vmatpush2.bf16.msra.mxu0 0
    %1122 = vmatprep.subr.bf16.mxu0 0
    %1123 = vmatpush2.bf16.msra.mxu0 0
    %1124 = vmatprep.subr.bf16.mxu0 0
    %1125 = vmatpush2.bf16.msra.mxu0 0
    %1126 = vmatprep.subr.bf16.mxu0 0
    %1127 = vmatpush2.bf16.msra.mxu0 0
    %1128 = vmatprep.subr.bf16.mxu0 0
    %1129 = vmatpush2.bf16.msra.mxu0 0
    %1130 = vmatprep.mubr.bf16.mxu0 0
    %1131 = vmatmul.mubr.bf16.gmra.mxu0 %v940
    %v1132 = vpop.f32.mrf.mxu0
    %v1133 = vadd.f32 %v922, %v1132
    %v1134 = vpop.f32.mrf.mxu0
    %v1135 = vpop.f32.mrf.mxu0
    %v1136 = vpop.f32.mrf.mxu0
    %1137 = vdwg.mxu0
    %v1139 = vsel %vm98, %v882, 0
    %1141 = vmatprep.subr.bf16.mxu0 0
    %1142 = vmatpush1.bf16.msra.mxu0 0
    %1143 = vmatprep.subr.bf16.mxu0 0
    %1144 = vmatpush1.bf16.msra.mxu0 0
    %1145 = vmatprep.subr.bf16.mxu0 0
    %1146 = vmatpush1.bf16.msra.mxu0 0
    %1147 = vmatprep.subr.bf16.mxu0 0
    %1148 = vmatpush1.bf16.msra.mxu0 0
    %1149 = vmatprep.subr.bf16.mxu0 0
    %1150 = vmatpush1.bf16.msra.mxu0 0
    %1151 = vmatprep.subr.bf16.mxu0 0
    %1152 = vmatpush1.bf16.msra.mxu0 0
    %1153 = vmatprep.subr.bf16.mxu0 0
    %1154 = vmatpush1.bf16.msra.mxu0 %v936
    %1155 = vmatprep.subr.bf16.mxu0 0
    %1156 = vmatpush1.bf16.msra.mxu0 %v935
    %1157 = vmatprep.subr.bf16.mxu0 0
    %1158 = vmatpush2.bf16.msra.mxu0 0
    %1159 = vmatprep.subr.bf16.mxu0 0
    %1160 = vmatpush2.bf16.msra.mxu0 0
    %1161 = vmatprep.subr.bf16.mxu0 0
    %1162 = vmatpush2.bf16.msra.mxu0 0
    %1163 = vmatprep.subr.bf16.mxu0 0
    %1164 = vmatpush2.bf16.msra.mxu0 0
    %1165 = vmatprep.subr.bf16.mxu0 0
    %1166 = vmatpush2.bf16.msra.mxu0 0
    %1167 = vmatprep.subr.bf16.mxu0 0
    %1168 = vmatpush2.bf16.msra.mxu0 0
    %1169 = vmatprep.subr.bf16.mxu0 0
    %1170 = vmatpush2.bf16.msra.mxu0 0
    %1171 = vmatprep.subr.bf16.mxu0 0
    %1172 = vmatpush2.bf16.msra.mxu0 0
    %1173 = vmatprep.mubr.bf16.mxu0 0
    %1174 = vmatmul.mubr.bf16.gmra.mxu0 %v1139
    %v1175 = vpop.f32.mrf.mxu0
    %v1176 = vadd.f32 %v910, %v1175
    %v1177 = vpop.f32.mrf.mxu0
    %v1178 = vpop.f32.mrf.mxu0
    %v1179 = vpop.f32.mrf.mxu0
    %1180 = vdwg.mxu0
    %1181 = vmatprep.subr.bf16.mxu0 0
    %1182 = vmatpush1.bf16.msra.mxu0 0
    %1183 = vmatprep.subr.bf16.mxu0 0
    %1184 = vmatpush1.bf16.msra.mxu0 0
    %1185 = vmatprep.subr.bf16.mxu0 0
    %1186 = vmatpush1.bf16.msra.mxu0 0
    %1187 = vmatprep.subr.bf16.mxu0 0
    %1188 = vmatpush1.bf16.msra.mxu0 0
    %1189 = vmatprep.subr.bf16.mxu0 0
    %1190 = vmatpush1.bf16.msra.mxu0 0
    %1191 = vmatprep.subr.bf16.mxu0 0
    %1192 = vmatpush1.bf16.msra.mxu0 0
    %1193 = vmatprep.subr.bf16.mxu0 0
    %1194 = vmatpush1.bf16.msra.mxu0 %v991
    %1195 = vmatprep.subr.bf16.mxu0 0
    %1196 = vmatpush1.bf16.msra.mxu0 %v990
    %1197 = vmatprep.subr.bf16.mxu0 0
    %1198 = vmatpush2.bf16.msra.mxu0 0
    %1199 = vmatprep.subr.bf16.mxu0 0
    %1200 = vmatpush2.bf16.msra.mxu0 0
    %1201 = vmatprep.subr.bf16.mxu0 0
    %1202 = vmatpush2.bf16.msra.mxu0 0
    %1203 = vmatprep.subr.bf16.mxu0 0
    %1204 = vmatpush2.bf16.msra.mxu0 0
    %1205 = vmatprep.subr.bf16.mxu0 0
    %1206 = vmatpush2.bf16.msra.mxu0 0
    %1207 = vmatprep.subr.bf16.mxu0 0
    %1208 = vmatpush2.bf16.msra.mxu0 0
    %1209 = vmatprep.subr.bf16.mxu0 0
    %1210 = vmatpush2.bf16.msra.mxu0 0
    %1211 = vmatprep.subr.bf16.mxu0 0
    %1212 = vmatpush2.bf16.msra.mxu0 0
    %1213 = vmatprep.mubr.bf16.mxu0 0
    %1214 = vmatmul.mubr.bf16.gmra.mxu0 %v1139
    %v1215 = vpop.f32.mrf.mxu0
    %v1216 = vadd.f32 %v914, %v1215
    %v1217 = vpop.f32.mrf.mxu0
    %v1218 = vpop.f32.mrf.mxu0
    %v1219 = vpop.f32.mrf.mxu0
    %1220 = vdwg.mxu0
    %1221 = vmatprep.subr.bf16.mxu0 0
    %1222 = vmatpush1.bf16.msra.mxu0 0
    %1223 = vmatprep.subr.bf16.mxu0 0
    %1224 = vmatpush1.bf16.msra.mxu0 0
    %1225 = vmatprep.subr.bf16.mxu0 0
    %1226 = vmatpush1.bf16.msra.mxu0 0
    %1227 = vmatprep.subr.bf16.mxu0 0
    %1228 = vmatpush1.bf16.msra.mxu0 0
    %1229 = vmatprep.subr.bf16.mxu0 0
    %1230 = vmatpush1.bf16.msra.mxu0 0
    %1231 = vmatprep.subr.bf16.mxu0 0
    %1232 = vmatpush1.bf16.msra.mxu0 0
    %1233 = vmatprep.subr.bf16.mxu0 0
    %1234 = vmatpush1.bf16.msra.mxu0 %v1043
    %1235 = vmatprep.subr.bf16.mxu0 0
    %1236 = vmatpush1.bf16.msra.mxu0 %v1042
    %1237 = vmatprep.subr.bf16.mxu0 0
    %1238 = vmatpush2.bf16.msra.mxu0 0
    %1239 = vmatprep.subr.bf16.mxu0 0
    %1240 = vmatpush2.bf16.msra.mxu0 0
    %1241 = vmatprep.subr.bf16.mxu0 0
    %1242 = vmatpush2.bf16.msra.mxu0 0
    %1243 = vmatprep.subr.bf16.mxu0 0
    %1244 = vmatpush2.bf16.msra.mxu0 0
    %1245 = vmatprep.subr.bf16.mxu0 0
    %1246 = vmatpush2.bf16.msra.mxu0 0
    %1247 = vmatprep.subr.bf16.mxu0 0
    %1248 = vmatpush2.bf16.msra.mxu0 0
    %1249 = vmatprep.subr.bf16.mxu0 0
    %1250 = vmatpush2.bf16.msra.mxu0 0
    %1251 = vmatprep.subr.bf16.mxu0 0
    %1252 = vmatpush2.bf16.msra.mxu0 0
    %1253 = vmatprep.mubr.bf16.mxu0 0
    %1254 = vmatmul.mubr.bf16.gmra.mxu0 %v1139
    %v1255 = vpop.f32.mrf.mxu0
    %v1256 = vadd.f32 %v918, %v1255
    %v1257 = vpop.f32.mrf.mxu0
    %v1258 = vpop.f32.mrf.mxu0
    %v1259 = vpop.f32.mrf.mxu0
    %1260 = vdwg.mxu0
    %1261 = vmatprep.subr.bf16.mxu0 0
    %1262 = vmatpush1.bf16.msra.mxu0 0
    %1263 = vmatprep.subr.bf16.mxu0 0
    %1264 = vmatpush1.bf16.msra.mxu0 0
    %1265 = vmatprep.subr.bf16.mxu0 0
    %1266 = vmatpush1.bf16.msra.mxu0 0
    %1267 = vmatprep.subr.bf16.mxu0 0
    %1268 = vmatpush1.bf16.msra.mxu0 0
    %1269 = vmatprep.subr.bf16.mxu0 0
    %1270 = vmatpush1.bf16.msra.mxu0 0
    %1271 = vmatprep.subr.bf16.mxu0 0
    %1272 = vmatpush1.bf16.msra.mxu0 0
    %1273 = vmatprep.subr.bf16.mxu0 0
    %1274 = vmatpush1.bf16.msra.mxu0 %v1095
    %1275 = vmatprep.subr.bf16.mxu0 0
    %1276 = vmatpush1.bf16.msra.mxu0 %v1094
    %1277 = vmatprep.subr.bf16.mxu0 0
    %1278 = vmatpush2.bf16.msra.mxu0 0
    %1279 = vmatprep.subr.bf16.mxu0 0
    %1280 = vmatpush2.bf16.msra.mxu0 0
    %1281 = vmatprep.subr.bf16.mxu0 0
    %1282 = vmatpush2.bf16.msra.mxu0 0
    %1283 = vmatprep.subr.bf16.mxu0 0
    %1284 = vmatpush2.bf16.msra.mxu0 0
    %1285 = vmatprep.subr.bf16.mxu0 0
    %1286 = vmatpush2.bf16.msra.mxu0 0
    %1287 = vmatprep.subr.bf16.mxu0 0
    %1288 = vmatpush2.bf16.msra.mxu0 0
    %1289 = vmatprep.subr.bf16.mxu0 0
    %1290 = vmatpush2.bf16.msra.mxu0 0
    %1291 = vmatprep.subr.bf16.mxu0 0
    %1292 = vmatpush2.bf16.msra.mxu0 0
    %1293 = vmatprep.mubr.bf16.mxu0 0
    %1294 = vmatmul.mubr.bf16.gmra.mxu0 %v1139
    %v1295 = vpop.f32.mrf.mxu0
    %v1296 = vadd.f32 %v922, %v1295
    %v1297 = vpop.f32.mrf.mxu0
    %v1298 = vpop.f32.mrf.mxu0
    %v1299 = vpop.f32.mrf.mxu0
    %1300 = vdwg.mxu0
    %v1301 = vpack.c.bf16 %v137, %v137
    %v1302 = vpack.c.bf16 %v189, %v189
    %v1303 = vpack.c.bf16 %v241, %v241
    %v1304 = vpack.c.bf16 %v293, %v293
    %v1305 = vpack.c.bf16 %v336, %v336
    %v1306 = vpack.c.bf16 %v376, %v376
    %v1307 = vpack.c.bf16 %v416, %v416
    %v1308 = vpack.c.bf16 %v456, %v456
    %v1309 = vpack.c.bf16 %v557, %v557
    %v1310 = vpack.c.bf16 %v609, %v609
    %v1311 = vpack.c.bf16 %v661, %v661
    %v1312 = vpack.c.bf16 %v713, %v713
    %v1313 = vpack.c.bf16 %v756, %v756
    %v1314 = vpack.c.bf16 %v796, %v796
    %v1315 = vpack.c.bf16 %v836, %v836
    %v1316 = vpack.c.bf16 %v876, %v876
    %vm1317 = vcmask 64512
    %v1319 = vsel %vm1317, %v1301, 0
    %v1322 = vsel %vm1317, %v1309, 0
    %1324 = vmatprep.subr.bf16.mxu0 0
    %1325 = vmatpush1.bf16.xpose.msra.mxu0 0
    %1326 = vmatprep.subr.bf16.mxu0 0
    %1327 = vmatpush1.bf16.xpose.msra.mxu0 0
    %1328 = vmatprep.subr.bf16.mxu0 0
    %1329 = vmatpush1.bf16.xpose.msra.mxu0 0
    %1330 = vmatprep.subr.bf16.mxu0 0
    %1331 = vmatpush1.bf16.xpose.msra.mxu0 0
    %1332 = vmatprep.subr.bf16.mxu0 0
    %1333 = vmatpush1.bf16.xpose.msra.mxu0 0
    %1334 = vmatprep.subr.bf16.mxu0 0
    %1335 = vmatpush1.bf16.xpose.msra.mxu0 0
    %1336 = vmatprep.subr.bf16.mxu0 0
    %1337 = vmatpush1.bf16.xpose.msra.mxu0 0
    %1338 = vmatprep.subr.bf16.mxu0 0
    %1339 = vmatpush1.bf16.xpose.msra.mxu0 %v1322
    %1340 = vmatprep.subr.bf16.mxu0 0
    %1341 = vmatpush2.bf16.xpose.msra.mxu0 0
    %1342 = vmatprep.subr.bf16.mxu0 0
    %1343 = vmatpush2.bf16.xpose.msra.mxu0 0
    %1344 = vmatprep.subr.bf16.mxu0 0
    %1345 = vmatpush2.bf16.xpose.msra.mxu0 0
    %1346 = vmatprep.subr.bf16.mxu0 0
    %1347 = vmatpush2.bf16.xpose.msra.mxu0 0
    %1348 = vmatprep.subr.bf16.mxu0 0
    %1349 = vmatpush2.bf16.xpose.msra.mxu0 0
    %1350 = vmatprep.subr.bf16.mxu0 0
    %1351 = vmatpush2.bf16.xpose.msra.mxu0 0
    %1352 = vmatprep.subr.bf16.mxu0 0
    %1353 = vmatpush2.bf16.xpose.msra.mxu0 0
    %1354 = vmatprep.subr.bf16.mxu0 0
    %1355 = vmatpush2.bf16.xpose.msra.mxu0 0
    %1356 = vmatprep.mubr.bf16.mxu0 0
    %1357 = vmatmul.mubr.bf16.gmra.mxu0 %v1319
    %v1358 = vpop.f32.mrf.mxu0
    %v1359 = vadd.f32 0.0, %v1358
    %v1360 = vpop.f32.mrf.mxu0
    %v1361 = vpop.f32.mrf.mxu0
    %v1362 = vpop.f32.mrf.mxu0
    %1363 = vdwg.mxu0
    %v1365 = vsel %vm1317, %v1302, 0
    %v1368 = vsel %vm1317, %v1310, 0
    %1370 = vmatprep.subr.bf16.mxu0 0
    %1371 = vmatpush1.bf16.xpose.msra.mxu0 0
    %1372 = vmatprep.subr.bf16.mxu0 0
    %1373 = vmatpush1.bf16.xpose.msra.mxu0 0
    %1374 = vmatprep.subr.bf16.mxu0 0
    %1375 = vmatpush1.bf16.xpose.msra.mxu0 0
    %1376 = vmatprep.subr.bf16.mxu0 0
    %1377 = vmatpush1.bf16.xpose.msra.mxu0 0
    %1378 = vmatprep.subr.bf16.mxu0 0
    %1379 = vmatpush1.bf16.xpose.msra.mxu0 0
    %1380 = vmatprep.subr.bf16.mxu0 0
    %1381 = vmatpush1.bf16.xpose.msra.mxu0 0
    %1382 = vmatprep.subr.bf16.mxu0 0
    %1383 = vmatpush1.bf16.xpose.msra.mxu0 0
    %1384 = vmatprep.subr.bf16.mxu0 0
    %1385 = vmatpush1.bf16.xpose.msra.mxu0 %v1368
    %1386 = vmatprep.subr.bf16.mxu0 0
    %1387 = vmatpush2.bf16.xpose.msra.mxu0 0
    %1388 = vmatprep.subr.bf16.mxu0 0
    %1389 = vmatpush2.bf16.xpose.msra.mxu0 0
    %1390 = vmatprep.subr.bf16.mxu0 0
    %1391 = vmatpush2.bf16.xpose.msra.mxu0 0
    %1392 = vmatprep.subr.bf16.mxu0 0
    %1393 = vmatpush2.bf16.xpose.msra.mxu0 0
    %1394 = vmatprep.subr.bf16.mxu0 0
    %1395 = vmatpush2.bf16.xpose.msra.mxu0 0
    %1396 = vmatprep.subr.bf16.mxu0 0
    %1397 = vmatpush2.bf16.xpose.msra.mxu0 0
    %1398 = vmatprep.subr.bf16.mxu0 0
    %1399 = vmatpush2.bf16.xpose.msra.mxu0 0
    %1400 = vmatprep.subr.bf16.mxu0 0
    %1401 = vmatpush2.bf16.xpose.msra.mxu0 0
    %1402 = vmatprep.mubr.bf16.mxu0 0
    %1403 = vmatmul.mubr.bf16.gmra.mxu0 %v1365
    %v1404 = vpop.f32.mrf.mxu0
    %v1405 = vadd.f32 0.0, %v1404
    %v1406 = vpop.f32.mrf.mxu0
    %v1407 = vpop.f32.mrf.mxu0
    %v1408 = vpop.f32.mrf.mxu0
    %1409 = vdwg.mxu0
    %v1411 = vsel %vm1317, %v1303, 0
    %v1414 = vsel %vm1317, %v1311, 0
    %1416 = vmatprep.subr.bf16.mxu0 0
    %1417 = vmatpush1.bf16.xpose.msra.mxu0 0
    %1418 = vmatprep.subr.bf16.mxu0 0
    %1419 = vmatpush1.bf16.xpose.msra.mxu0 0
    %1420 = vmatprep.subr.bf16.mxu0 0
    %1421 = vmatpush1.bf16.xpose.msra.mxu0 0
    %1422 = vmatprep.subr.bf16.mxu0 0
    %1423 = vmatpush1.bf16.xpose.msra.mxu0 0
    %1424 = vmatprep.subr.bf16.mxu0 0
    %1425 = vmatpush1.bf16.xpose.msra.mxu0 0
    %1426 = vmatprep.subr.bf16.mxu0 0
    %1427 = vmatpush1.bf16.xpose.msra.mxu0 0
    %1428 = vmatprep.subr.bf16.mxu0 0
    %1429 = vmatpush1.bf16.xpose.msra.mxu0 0
    %1430 = vmatprep.subr.bf16.mxu0 0
    %1431 = vmatpush1.bf16.xpose.msra.mxu0 %v1414
    %1432 = vmatprep.subr.bf16.mxu0 0
    %1433 = vmatpush2.bf16.xpose.msra.mxu0 0
    %1434 = vmatprep.subr.bf16.mxu0 0
    %1435 = vmatpush2.bf16.xpose.msra.mxu0 0
    %1436 = vmatprep.subr.bf16.mxu0 0
    %1437 = vmatpush2.bf16.xpose.msra.mxu0 0
    %1438 = vmatprep.subr.bf16.mxu0 0
    %1439 = vmatpush2.bf16.xpose.msra.mxu0 0
    %1440 = vmatprep.subr.bf16.mxu0 0
    %1441 = vmatpush2.bf16.xpose.msra.mxu0 0
    %1442 = vmatprep.subr.bf16.mxu0 0
    %1443 = vmatpush2.bf16.xpose.msra.mxu0 0
    %1444 = vmatprep.subr.bf16.mxu0 0
    %1445 = vmatpush2.bf16.xpose.msra.mxu0 0
    %1446 = vmatprep.subr.bf16.mxu0 0
    %1447 = vmatpush2.bf16.xpose.msra.mxu0 0
    %1448 = vmatprep.mubr.bf16.mxu0 0
    %1449 = vmatmul.mubr.bf16.gmra.mxu0 %v1411
    %v1450 = vpop.f32.mrf.mxu0
    %v1451 = vadd.f32 0.0, %v1450
    %v1452 = vpop.f32.mrf.mxu0
    %v1453 = vpop.f32.mrf.mxu0
    %v1454 = vpop.f32.mrf.mxu0
    %1455 = vdwg.mxu0
    %v1457 = vsel %vm1317, %v1304, 0
    %v1460 = vsel %vm1317, %v1312, 0
    %1462 = vmatprep.subr.bf16.mxu0 0
    %1463 = vmatpush1.bf16.xpose.msra.mxu0 0
    %1464 = vmatprep.subr.bf16.mxu0 0
    %1465 = vmatpush1.bf16.xpose.msra.mxu0 0
    %1466 = vmatprep.subr.bf16.mxu0 0
    %1467 = vmatpush1.bf16.xpose.msra.mxu0 0
    %1468 = vmatprep.subr.bf16.mxu0 0
    %1469 = vmatpush1.bf16.xpose.msra.mxu0 0
    %1470 = vmatprep.subr.bf16.mxu0 0
    %1471 = vmatpush1.bf16.xpose.msra.mxu0 0
    %1472 = vmatprep.subr.bf16.mxu0 0
    %1473 = vmatpush1.bf16.xpose.msra.mxu0 0
    %1474 = vmatprep.subr.bf16.mxu0 0
    %1475 = vmatpush1.bf16.xpose.msra.mxu0 0
    %1476 = vmatprep.subr.bf16.mxu0 0
    %1477 = vmatpush1.bf16.xpose.msra.mxu0 %v1460
    %1478 = vmatprep.subr.bf16.mxu0 0
    %1479 = vmatpush2.bf16.xpose.msra.mxu0 0
    %1480 = vmatprep.subr.bf16.mxu0 0
    %1481 = vmatpush2.bf16.xpose.msra.mxu0 0
    %1482 = vmatprep.subr.bf16.mxu0 0
    %1483 = vmatpush2.bf16.xpose.msra.mxu0 0
    %1484 = vmatprep.subr.bf16.mxu0 0
    %1485 = vmatpush2.bf16.xpose.msra.mxu0 0
    %1486 = vmatprep.subr.bf16.mxu0 0
    %1487 = vmatpush2.bf16.xpose.msra.mxu0 0
    %1488 = vmatprep.subr.bf16.mxu0 0
    %1489 = vmatpush2.bf16.xpose.msra.mxu0 0
    %1490 = vmatprep.subr.bf16.mxu0 0
    %1491 = vmatpush2.bf16.xpose.msra.mxu0 0
    %1492 = vmatprep.subr.bf16.mxu0 0
    %1493 = vmatpush2.bf16.xpose.msra.mxu0 0
    %1494 = vmatprep.mubr.bf16.mxu0 0
    %1495 = vmatmul.mubr.bf16.gmra.mxu0 %v1457
    %v1496 = vpop.f32.mrf.mxu0
    %v1497 = vadd.f32 0.0, %v1496
    %v1498 = vpop.f32.mrf.mxu0
    %v1499 = vpop.f32.mrf.mxu0
    %v1500 = vpop.f32.mrf.mxu0
    %1501 = vdwg.mxu0
    %v1503 = vsel %vm1317, %v1305, 0
    %v1506 = vsel %vm1317, %v1313, 0
    %1508 = vmatprep.subr.bf16.mxu0 0
    %1509 = vmatpush1.bf16.xpose.msra.mxu0 0
    %1510 = vmatprep.subr.bf16.mxu0 0
    %1511 = vmatpush1.bf16.xpose.msra.mxu0 0
    %1512 = vmatprep.subr.bf16.mxu0 0
    %1513 = vmatpush1.bf16.xpose.msra.mxu0 0
    %1514 = vmatprep.subr.bf16.mxu0 0
    %1515 = vmatpush1.bf16.xpose.msra.mxu0 0
    %1516 = vmatprep.subr.bf16.mxu0 0
    %1517 = vmatpush1.bf16.xpose.msra.mxu0 0
    %1518 = vmatprep.subr.bf16.mxu0 0
    %1519 = vmatpush1.bf16.xpose.msra.mxu0 0
    %1520 = vmatprep.subr.bf16.mxu0 0
    %1521 = vmatpush1.bf16.xpose.msra.mxu0 0
    %1522 = vmatprep.subr.bf16.mxu0 0
    %1523 = vmatpush1.bf16.xpose.msra.mxu0 %v1506
    %1524 = vmatprep.subr.bf16.mxu0 0
    %1525 = vmatpush2.bf16.xpose.msra.mxu0 0
    %1526 = vmatprep.subr.bf16.mxu0 0
    %1527 = vmatpush2.bf16.xpose.msra.mxu0 0
    %1528 = vmatprep.subr.bf16.mxu0 0
    %1529 = vmatpush2.bf16.xpose.msra.mxu0 0
    %1530 = vmatprep.subr.bf16.mxu0 0
    %1531 = vmatpush2.bf16.xpose.msra.mxu0 0
    %1532 = vmatprep.subr.bf16.mxu0 0
    %1533 = vmatpush2.bf16.xpose.msra.mxu0 0
    %1534 = vmatprep.subr.bf16.mxu0 0
    %1535 = vmatpush2.bf16.xpose.msra.mxu0 0
    %1536 = vmatprep.subr.bf16.mxu0 0
    %1537 = vmatpush2.bf16.xpose.msra.mxu0 0
    %1538 = vmatprep.subr.bf16.mxu0 0
    %1539 = vmatpush2.bf16.xpose.msra.mxu0 0
    %1540 = vmatprep.mubr.bf16.mxu0 0
    %1541 = vmatmul.mubr.bf16.gmra.mxu0 %v1503
    %v1542 = vpop.f32.mrf.mxu0
    %v1543 = vadd.f32 0.0, %v1542
    %v1544 = vpop.f32.mrf.mxu0
    %v1545 = vpop.f32.mrf.mxu0
    %v1546 = vpop.f32.mrf.mxu0
    %1547 = vdwg.mxu0
    %v1549 = vsel %vm1317, %v1306, 0
    %v1552 = vsel %vm1317, %v1314, 0
    %1554 = vmatprep.subr.bf16.mxu0 0
    %1555 = vmatpush1.bf16.xpose.msra.mxu0 0
    %1556 = vmatprep.subr.bf16.mxu0 0
    %1557 = vmatpush1.bf16.xpose.msra.mxu0 0
    %1558 = vmatprep.subr.bf16.mxu0 0
    %1559 = vmatpush1.bf16.xpose.msra.mxu0 0
    %1560 = vmatprep.subr.bf16.mxu0 0
    %1561 = vmatpush1.bf16.xpose.msra.mxu0 0
    %1562 = vmatprep.subr.bf16.mxu0 0
    %1563 = vmatpush1.bf16.xpose.msra.mxu0 0
    %1564 = vmatprep.subr.bf16.mxu0 0
    %1565 = vmatpush1.bf16.xpose.msra.mxu0 0
    %1566 = vmatprep.subr.bf16.mxu0 0
    %1567 = vmatpush1.bf16.xpose.msra.mxu0 0
    %1568 = vmatprep.subr.bf16.mxu0 0
    %1569 = vmatpush1.bf16.xpose.msra.mxu0 %v1552
    %1570 = vmatprep.subr.bf16.mxu0 0
    %1571 = vmatpush2.bf16.xpose.msra.mxu0 0
    %1572 = vmatprep.subr.bf16.mxu0 0
    %1573 = vmatpush2.bf16.xpose.msra.mxu0 0
    %1574 = vmatprep.subr.bf16.mxu0 0
    %1575 = vmatpush2.bf16.xpose.msra.mxu0 0
    %1576 = vmatprep.subr.bf16.mxu0 0
    %1577 = vmatpush2.bf16.xpose.msra.mxu0 0
    %1578 = vmatprep.subr.bf16.mxu0 0
    %1579 = vmatpush2.bf16.xpose.msra.mxu0 0
    %1580 = vmatprep.subr.bf16.mxu0 0
    %1581 = vmatpush2.bf16.xpose.msra.mxu0 0
    %1582 = vmatprep.subr.bf16.mxu0 0
    %1583 = vmatpush2.bf16.xpose.msra.mxu0 0
    %1584 = vmatprep.subr.bf16.mxu0 0
    %1585 = vmatpush2.bf16.xpose.msra.mxu0 0
    %1586 = vmatprep.mubr.bf16.mxu0 0
    %1587 = vmatmul.mubr.bf16.gmra.mxu0 %v1549
    %v1588 = vpop.f32.mrf.mxu0
    %v1589 = vadd.f32 0.0, %v1588
    %v1590 = vpop.f32.mrf.mxu0
    %v1591 = vpop.f32.mrf.mxu0
    %v1592 = vpop.f32.mrf.mxu0
    %1593 = vdwg.mxu0
    %v1595 = vsel %vm1317, %v1307, 0
    %v1598 = vsel %vm1317, %v1315, 0
    %1600 = vmatprep.subr.bf16.mxu0 0
    %1601 = vmatpush1.bf16.xpose.msra.mxu0 0
    %1602 = vmatprep.subr.bf16.mxu0 0
    %1603 = vmatpush1.bf16.xpose.msra.mxu0 0
    %1604 = vmatprep.subr.bf16.mxu0 0
    %1605 = vmatpush1.bf16.xpose.msra.mxu0 0
    %1606 = vmatprep.subr.bf16.mxu0 0
    %1607 = vmatpush1.bf16.xpose.msra.mxu0 0
    %1608 = vmatprep.subr.bf16.mxu0 0
    %1609 = vmatpush1.bf16.xpose.msra.mxu0 0
    %1610 = vmatprep.subr.bf16.mxu0 0
    %1611 = vmatpush1.bf16.xpose.msra.mxu0 0
    %1612 = vmatprep.subr.bf16.mxu0 0
    %1613 = vmatpush1.bf16.xpose.msra.mxu0 0
    %1614 = vmatprep.subr.bf16.mxu0 0
    %1615 = vmatpush1.bf16.xpose.msra.mxu0 %v1598
    %1616 = vmatprep.subr.bf16.mxu0 0
    %1617 = vmatpush2.bf16.xpose.msra.mxu0 0
    %1618 = vmatprep.subr.bf16.mxu0 0
    %1619 = vmatpush2.bf16.xpose.msra.mxu0 0
    %1620 = vmatprep.subr.bf16.mxu0 0
    %1621 = vmatpush2.bf16.xpose.msra.mxu0 0
    %1622 = vmatprep.subr.bf16.mxu0 0
    %1623 = vmatpush2.bf16.xpose.msra.mxu0 0
    %1624 = vmatprep.subr.bf16.mxu0 0
    %1625 = vmatpush2.bf16.xpose.msra.mxu0 0
    %1626 = vmatprep.subr.bf16.mxu0 0
    %1627 = vmatpush2.bf16.xpose.msra.mxu0 0
    %1628 = vmatprep.subr.bf16.mxu0 0
    %1629 = vmatpush2.bf16.xpose.msra.mxu0 0
    %1630 = vmatprep.subr.bf16.mxu0 0
    %1631 = vmatpush2.bf16.xpose.msra.mxu0 0
    %1632 = vmatprep.mubr.bf16.mxu0 0
    %1633 = vmatmul.mubr.bf16.gmra.mxu0 %v1595
    %v1634 = vpop.f32.mrf.mxu0
    %v1635 = vadd.f32 0.0, %v1634
    %v1636 = vpop.f32.mrf.mxu0
    %v1637 = vpop.f32.mrf.mxu0
    %v1638 = vpop.f32.mrf.mxu0
    %1639 = vdwg.mxu0
    %v1641 = vsel %vm1317, %v1308, 0
    %v1644 = vsel %vm1317, %v1316, 0
    %1646 = vmatprep.subr.bf16.mxu0 0
    %1647 = vmatpush1.bf16.xpose.msra.mxu0 0
    %1648 = vmatprep.subr.bf16.mxu0 0
    %1649 = vmatpush1.bf16.xpose.msra.mxu0 0
    %1650 = vmatprep.subr.bf16.mxu0 0
    %1651 = vmatpush1.bf16.xpose.msra.mxu0 0
    %1652 = vmatprep.subr.bf16.mxu0 0
    %1653 = vmatpush1.bf16.xpose.msra.mxu0 0
    %1654 = vmatprep.subr.bf16.mxu0 0
    %1655 = vmatpush1.bf16.xpose.msra.mxu0 0
    %1656 = vmatprep.subr.bf16.mxu0 0
    %1657 = vmatpush1.bf16.xpose.msra.mxu0 0
    %1658 = vmatprep.subr.bf16.mxu0 0
    %1659 = vmatpush1.bf16.xpose.msra.mxu0 0
    %1660 = vmatprep.subr.bf16.mxu0 0
    %1661 = vmatpush1.bf16.xpose.msra.mxu0 %v1644
    %1662 = vmatprep.subr.bf16.mxu0 0
    %1663 = vmatpush2.bf16.xpose.msra.mxu0 0
    %1664 = vmatprep.subr.bf16.mxu0 0
    %1665 = vmatpush2.bf16.xpose.msra.mxu0 0
    %1666 = vmatprep.subr.bf16.mxu0 0
    %1667 = vmatpush2.bf16.xpose.msra.mxu0 0
    %1668 = vmatprep.subr.bf16.mxu0 0
    %1669 = vmatpush2.bf16.xpose.msra.mxu0 0
    %1670 = vmatprep.subr.bf16.mxu0 0
    %1671 = vmatpush2.bf16.xpose.msra.mxu0 0
    %1672 = vmatprep.subr.bf16.mxu0 0
    %1673 = vmatpush2.bf16.xpose.msra.mxu0 0
    %1674 = vmatprep.subr.bf16.mxu0 0
    %1675 = vmatpush2.bf16.xpose.msra.mxu0 0
    %1676 = vmatprep.subr.bf16.mxu0 0
    %1677 = vmatpush2.bf16.xpose.msra.mxu0 0
    %1678 = vmatprep.mubr.bf16.mxu0 0
    %1679 = vmatmul.mubr.bf16.gmra.mxu0 %v1641
    %v1680 = vpop.f32.mrf.mxu0
    %v1681 = vadd.f32 0.0, %v1680
    %v1682 = vpop.f32.mrf.mxu0
    %v1683 = vpop.f32.mrf.mxu0
    %v1684 = vpop.f32.mrf.mxu0
    %1685 = vdwg.mxu0
    %v1686 = vsel %vm1317, %v1359, -inf
    %1687 = vmax.xlane.f32.xlu0 %v1686
    %v1688 = vpop.xlane.xlu0 %1687
    %v1689 = vsel %vm1317, %v1405, -inf
    %1690 = vmax.xlane.f32.xlu0 %v1689
    %v1691 = vpop.xlane.xlu0 %1690
    %v1692 = vsel %vm1317, %v1451, -inf
    %1693 = vmax.xlane.f32.xlu0 %v1692
    %v1694 = vpop.xlane.xlu0 %1693
    %v1695 = vsel %vm1317, %v1497, -inf
    %1696 = vmax.xlane.f32.xlu0 %v1695
    %v1697 = vpop.xlane.xlu0 %1696
    %v1698 = vsel %vm1317, %v1543, -inf
    %1699 = vmax.xlane.f32.xlu0 %v1698
    %v1700 = vpop.xlane.xlu0 %1699
    %v1701 = vsel %vm1317, %v1589, -inf
    %1702 = vmax.xlane.f32.xlu0 %v1701
    %v1703 = vpop.xlane.xlu0 %1702
    %v1704 = vsel %vm1317, %v1635, -inf
    %1705 = vmax.xlane.f32.xlu0 %v1704
    %v1706 = vpop.xlane.xlu0 %1705
    %v1707 = vsel %vm1317, %v1681, -inf
    %1708 = vmax.xlane.f32.xlu0 %v1707
    %v1709 = vpop.xlane.xlu0 %1708
    %v1710 = vsub.f32 %v1359, %v1688
    %v1711 = vsub.f32 %v1405, %v1691
    %v1712 = vsub.f32 %v1451, %v1694
    %v1713 = vsub.f32 %v1497, %v1697
    %v1714 = vsub.f32 %v1543, %v1700
    %v1715 = vsub.f32 %v1589, %v1703
    %v1716 = vsub.f32 %v1635, %v1706
    %v1717 = vsub.f32 %v1681, %v1709
    %v1718 = vmul.f32 %v1710, 1.442695
    %v1719 = vpow.pop %v1718
    %v1720 = vmul.f32 %v1711, 1.442695
    %v1721 = vpow.pop %v1720
    %v1722 = vmul.f32 %v1712, 1.442695
    %v1723 = vpow.pop %v1722
    %v1724 = vmul.f32 %v1713, 1.442695
    %v1725 = vpow.pop %v1724
    %v1726 = vmul.f32 %v1714, 1.442695
    %v1727 = vpow.pop %v1726
    %v1728 = vmul.f32 %v1715, 1.442695
    %v1729 = vpow.pop %v1728
    %v1730 = vmul.f32 %v1716, 1.442695
    %v1731 = vpow.pop %v1730
    %v1732 = vmul.f32 %v1717, 1.442695
    %v1733 = vpow.pop %v1732
    %v1734 = vsel %vm1317, %v1719, 0.0
    %1735 = vadd.xlane.f32.xlu0 %v1734
    %v1736 = vpop.xlane.xlu0 %1735
    %v1737 = vsel %vm1317, %v1721, 0.0
    %1738 = vadd.xlane.f32.xlu0 %v1737
    %v1739 = vpop.xlane.xlu0 %1738
    %v1740 = vsel %vm1317, %v1723, 0.0
    %1741 = vadd.xlane.f32.xlu0 %v1740
    %v1742 = vpop.xlane.xlu0 %1741
    %v1743 = vsel %vm1317, %v1725, 0.0
    %1744 = vadd.xlane.f32.xlu0 %v1743
    %v1745 = vpop.xlane.xlu0 %1744
    %v1746 = vsel %vm1317, %v1727, 0.0
    %1747 = vadd.xlane.f32.xlu0 %v1746
    %v1748 = vpop.xlane.xlu0 %1747
    %v1749 = vsel %vm1317, %v1729, 0.0
    %1750 = vadd.xlane.f32.xlu0 %v1749
    %v1751 = vpop.xlane.xlu0 %1750
    %v1752 = vsel %vm1317, %v1731, 0.0
    %1753 = vadd.xlane.f32.xlu0 %v1752
    %v1754 = vpop.xlane.xlu0 %1753
    %v1755 = vsel %vm1317, %v1733, 0.0
    %1756 = vadd.xlane.f32.xlu0 %v1755
    %v1757 = vpop.xlane.xlu0 %1756
    %v1758 = vrcp.pop %v1736
    %v1759 = vrcp.pop %v1739
    %v1760 = vrcp.pop %v1742
    %v1761 = vrcp.pop %v1745
    %v1762 = vrcp.pop %v1748
    %v1763 = vrcp.pop %v1751
    %v1764 = vrcp.pop %v1754
    %v1765 = vrcp.pop %v1757
    %v1766 = vmul.f32 %v1719, %v1758
    %v1767 = vmul.f32 %v1721, %v1759
    %v1768 = vmul.f32 %v1723, %v1760
    %v1769 = vmul.f32 %v1725, %v1761
    %v1770 = vmul.f32 %v1727, %v1762
    %v1771 = vmul.f32 %v1729, %v1763
    %v1772 = vmul.f32 %v1731, %v1764
    %v1773 = vmul.f32 %v1733, %v1765
    %v1774 = vpack.c.bf16 %v1766, %v1766
    %v1775 = vpack.c.bf16 %v1767, %v1767
    %v1776 = vpack.c.bf16 %v1768, %v1768
    %v1777 = vpack.c.bf16 %v1769, %v1769
    %v1778 = vpack.c.bf16 %v1770, %v1770
    %v1779 = vpack.c.bf16 %v1771, %v1771
    %v1780 = vpack.c.bf16 %v1772, %v1772
    %v1781 = vpack.c.bf16 %v1773, %v1773
    %v1782 = vpack.c.bf16 %v977, %v977
    %v1783 = vpack.c.bf16 %v1029, %v1029
    %v1784 = vpack.c.bf16 %v1081, %v1081
    %v1785 = vpack.c.bf16 %v1133, %v1133
    %v1786 = vpack.c.bf16 %v1176, %v1176
    %v1787 = vpack.c.bf16 %v1216, %v1216
    %v1788 = vpack.c.bf16 %v1256, %v1256
    %v1789 = vpack.c.bf16 %v1296, %v1296
    %v1791 = vsel %vm1317, %v1774, 0
    %vm1793 = vcmask 1043456
    %v1795 = vsel %vm1793, %v1782, 0
    %1797 = vmatprep.subr.bf16.mxu0 0
    %1798 = vmatpush1.bf16.msra.mxu0 0
    %1799 = vmatprep.subr.bf16.mxu0 0
    %1800 = vmatpush1.bf16.msra.mxu0 0
    %1801 = vmatprep.subr.bf16.mxu0 0
    %1802 = vmatpush1.bf16.msra.mxu0 0
    %1803 = vmatprep.subr.bf16.mxu0 0
    %1804 = vmatpush1.bf16.msra.mxu0 0
    %1805 = vmatprep.subr.bf16.mxu0 0
    %1806 = vmatpush1.bf16.msra.mxu0 0
    %1807 = vmatprep.subr.bf16.mxu0 0
    %1808 = vmatpush1.bf16.msra.mxu0 0
    %1809 = vmatprep.subr.bf16.mxu0 0
    %1810 = vmatpush1.bf16.msra.mxu0 0
    %1811 = vmatprep.subr.bf16.mxu0 0
    %1812 = vmatpush1.bf16.msra.mxu0 %v1795
    %1813 = vmatprep.subr.bf16.mxu0 0
    %1814 = vmatpush2.bf16.msra.mxu0 0
    %1815 = vmatprep.subr.bf16.mxu0 0
    %1816 = vmatpush2.bf16.msra.mxu0 0
    %1817 = vmatprep.subr.bf16.mxu0 0
    %1818 = vmatpush2.bf16.msra.mxu0 0
    %1819 = vmatprep.subr.bf16.mxu0 0
    %1820 = vmatpush2.bf16.msra.mxu0 0
    %1821 = vmatprep.subr.bf16.mxu0 0
    %1822 = vmatpush2.bf16.msra.mxu0 0
    %1823 = vmatprep.subr.bf16.mxu0 0
    %1824 = vmatpush2.bf16.msra.mxu0 0
    %1825 = vmatprep.subr.bf16.mxu0 0
    %1826 = vmatpush2.bf16.msra.mxu0 0
    %1827 = vmatprep.subr.bf16.mxu0 0
    %1828 = vmatpush2.bf16.msra.mxu0 0
    %1829 = vmatprep.mubr.bf16.mxu0 0
    %1830 = vmatmul.mubr.bf16.gmra.mxu0 %v1791
    %v1831 = vpop.f32.mrf.mxu0
    %v1832 = vadd.f32 0.0, %v1831
    %v1833 = vpop.f32.mrf.mxu0
    %v1834 = vpop.f32.mrf.mxu0
    %v1835 = vpop.f32.mrf.mxu0
    %1836 = vdwg.mxu0
    %v1838 = vsel %vm1317, %v1775, 0
    %v1841 = vsel %vm1793, %v1783, 0
    %1843 = vmatprep.subr.bf16.mxu0 0
    %1844 = vmatpush1.bf16.msra.mxu0 0
    %1845 = vmatprep.subr.bf16.mxu0 0
    %1846 = vmatpush1.bf16.msra.mxu0 0
    %1847 = vmatprep.subr.bf16.mxu0 0
    %1848 = vmatpush1.bf16.msra.mxu0 0
    %1849 = vmatprep.subr.bf16.mxu0 0
    %1850 = vmatpush1.bf16.msra.mxu0 0
    %1851 = vmatprep.subr.bf16.mxu0 0
    %1852 = vmatpush1.bf16.msra.mxu0 0
    %1853 = vmatprep.subr.bf16.mxu0 0
    %1854 = vmatpush1.bf16.msra.mxu0 0
    %1855 = vmatprep.subr.bf16.mxu0 0
    %1856 = vmatpush1.bf16.msra.mxu0 0
    %1857 = vmatprep.subr.bf16.mxu0 0
    %1858 = vmatpush1.bf16.msra.mxu0 %v1841
    %1859 = vmatprep.subr.bf16.mxu0 0
    %1860 = vmatpush2.bf16.msra.mxu0 0
    %1861 = vmatprep.subr.bf16.mxu0 0
    %1862 = vmatpush2.bf16.msra.mxu0 0
    %1863 = vmatprep.subr.bf16.mxu0 0
    %1864 = vmatpush2.bf16.msra.mxu0 0
    %1865 = vmatprep.subr.bf16.mxu0 0
    %1866 = vmatpush2.bf16.msra.mxu0 0
    %1867 = vmatprep.subr.bf16.mxu0 0
    %1868 = vmatpush2.bf16.msra.mxu0 0
    %1869 = vmatprep.subr.bf16.mxu0 0
    %1870 = vmatpush2.bf16.msra.mxu0 0
    %1871 = vmatprep.subr.bf16.mxu0 0
    %1872 = vmatpush2.bf16.msra.mxu0 0
    %1873 = vmatprep.subr.bf16.mxu0 0
    %1874 = vmatpush2.bf16.msra.mxu0 0
    %1875 = vmatprep.mubr.bf16.mxu0 0
    %1876 = vmatmul.mubr.bf16.gmra.mxu0 %v1838
    %v1877 = vpop.f32.mrf.mxu0
    %v1878 = vadd.f32 0.0, %v1877
    %v1879 = vpop.f32.mrf.mxu0
    %v1880 = vpop.f32.mrf.mxu0
    %v1881 = vpop.f32.mrf.mxu0
    %1882 = vdwg.mxu0
    %v1884 = vsel %vm1317, %v1776, 0
    %v1887 = vsel %vm1793, %v1784, 0
    %1889 = vmatprep.subr.bf16.mxu0 0
    %1890 = vmatpush1.bf16.msra.mxu0 0
    %1891 = vmatprep.subr.bf16.mxu0 0
    %1892 = vmatpush1.bf16.msra.mxu0 0
    %1893 = vmatprep.subr.bf16.mxu0 0
    %1894 = vmatpush1.bf16.msra.mxu0 0
    %1895 = vmatprep.subr.bf16.mxu0 0
    %1896 = vmatpush1.bf16.msra.mxu0 0
    %1897 = vmatprep.subr.bf16.mxu0 0
    %1898 = vmatpush1.bf16.msra.mxu0 0
    %1899 = vmatprep.subr.bf16.mxu0 0
    %1900 = vmatpush1.bf16.msra.mxu0 0
    %1901 = vmatprep.subr.bf16.mxu0 0
    %1902 = vmatpush1.bf16.msra.mxu0 0
    %1903 = vmatprep.subr.bf16.mxu0 0
    %1904 = vmatpush1.bf16.msra.mxu0 %v1887
    %1905 = vmatprep.subr.bf16.mxu0 0
    %1906 = vmatpush2.bf16.msra.mxu0 0
    %1907 = vmatprep.subr.bf16.mxu0 0
    %1908 = vmatpush2.bf16.msra.mxu0 0
    %1909 = vmatprep.subr.bf16.mxu0 0
    %1910 = vmatpush2.bf16.msra.mxu0 0
    %1911 = vmatprep.subr.bf16.mxu0 0
    %1912 = vmatpush2.bf16.msra.mxu0 0
    %1913 = vmatprep.subr.bf16.mxu0 0
    %1914 = vmatpush2.bf16.msra.mxu0 0
    %1915 = vmatprep.subr.bf16.mxu0 0
    %1916 = vmatpush2.bf16.msra.mxu0 0
    %1917 = vmatprep.subr.bf16.mxu0 0
    %1918 = vmatpush2.bf16.msra.mxu0 0
    %1919 = vmatprep.subr.bf16.mxu0 0
    %1920 = vmatpush2.bf16.msra.mxu0 0
    %1921 = vmatprep.mubr.bf16.mxu0 0
    %1922 = vmatmul.mubr.bf16.gmra.mxu0 %v1884
    %v1923 = vpop.f32.mrf.mxu0
    %v1924 = vadd.f32 0.0, %v1923
    %v1925 = vpop.f32.mrf.mxu0
    %v1926 = vpop.f32.mrf.mxu0
    %v1927 = vpop.f32.mrf.mxu0
    %1928 = vdwg.mxu0
    %v1930 = vsel %vm1317, %v1777, 0
    %v1933 = vsel %vm1793, %v1785, 0
    %1935 = vmatprep.subr.bf16.mxu0 0
    %1936 = vmatpush1.bf16.msra.mxu0 0
    %1937 = vmatprep.subr.bf16.mxu0 0
    %1938 = vmatpush1.bf16.msra.mxu0 0
    %1939 = vmatprep.subr.bf16.mxu0 0
    %1940 = vmatpush1.bf16.msra.mxu0 0
    %1941 = vmatprep.subr.bf16.mxu0 0
    %1942 = vmatpush1.bf16.msra.mxu0 0
    %1943 = vmatprep.subr.bf16.mxu0 0
    %1944 = vmatpush1.bf16.msra.mxu0 0
    %1945 = vmatprep.subr.bf16.mxu0 0
    %1946 = vmatpush1.bf16.msra.mxu0 0
    %1947 = vmatprep.subr.bf16.mxu0 0
    %1948 = vmatpush1.bf16.msra.mxu0 0
    %1949 = vmatprep.subr.bf16.mxu0 0
    %1950 = vmatpush1.bf16.msra.mxu0 %v1933
    %1951 = vmatprep.subr.bf16.mxu0 0
    %1952 = vmatpush2.bf16.msra.mxu0 0
    %1953 = vmatprep.subr.bf16.mxu0 0
    %1954 = vmatpush2.bf16.msra.mxu0 0
    %1955 = vmatprep.subr.bf16.mxu0 0
    %1956 = vmatpush2.bf16.msra.mxu0 0
    %1957 = vmatprep.subr.bf16.mxu0 0
    %1958 = vmatpush2.bf16.msra.mxu0 0
    %1959 = vmatprep.subr.bf16.mxu0 0
    %1960 = vmatpush2.bf16.msra.mxu0 0
    %1961 = vmatprep.subr.bf16.mxu0 0
    %1962 = vmatpush2.bf16.msra.mxu0 0
    %1963 = vmatprep.subr.bf16.mxu0 0
    %1964 = vmatpush2.bf16.msra.mxu0 0
    %1965 = vmatprep.subr.bf16.mxu0 0
    %1966 = vmatpush2.bf16.msra.mxu0 0
    %1967 = vmatprep.mubr.bf16.mxu0 0
    %1968 = vmatmul.mubr.bf16.gmra.mxu0 %v1930
    %v1969 = vpop.f32.mrf.mxu0
    %v1970 = vadd.f32 0.0, %v1969
    %v1971 = vpop.f32.mrf.mxu0
    %v1972 = vpop.f32.mrf.mxu0
    %v1973 = vpop.f32.mrf.mxu0
    %1974 = vdwg.mxu0
    %v1976 = vsel %vm1317, %v1778, 0
    %v1979 = vsel %vm1793, %v1786, 0
    %1981 = vmatprep.subr.bf16.mxu0 0
    %1982 = vmatpush1.bf16.msra.mxu0 0
    %1983 = vmatprep.subr.bf16.mxu0 0
    %1984 = vmatpush1.bf16.msra.mxu0 0
    %1985 = vmatprep.subr.bf16.mxu0 0
    %1986 = vmatpush1.bf16.msra.mxu0 0
    %1987 = vmatprep.subr.bf16.mxu0 0
    %1988 = vmatpush1.bf16.msra.mxu0 0
    %1989 = vmatprep.subr.bf16.mxu0 0
    %1990 = vmatpush1.bf16.msra.mxu0 0
    %1991 = vmatprep.subr.bf16.mxu0 0
    %1992 = vmatpush1.bf16.msra.mxu0 0
    %1993 = vmatprep.subr.bf16.mxu0 0
    %1994 = vmatpush1.bf16.msra.mxu0 0
    %1995 = vmatprep.subr.bf16.mxu0 0
    %1996 = vmatpush1.bf16.msra.mxu0 %v1979
    %1997 = vmatprep.subr.bf16.mxu0 0
    %1998 = vmatpush2.bf16.msra.mxu0 0
    %1999 = vmatprep.subr.bf16.mxu0 0
    %2000 = vmatpush2.bf16.msra.mxu0 0
    %2001 = vmatprep.subr.bf16.mxu0 0
    %2002 = vmatpush2.bf16.msra.mxu0 0
    %2003 = vmatprep.subr.bf16.mxu0 0
    %2004 = vmatpush2.bf16.msra.mxu0 0
    %2005 = vmatprep.subr.bf16.mxu0 0
    %2006 = vmatpush2.bf16.msra.mxu0 0
    %2007 = vmatprep.subr.bf16.mxu0 0
    %2008 = vmatpush2.bf16.msra.mxu0 0
    %2009 = vmatprep.subr.bf16.mxu0 0
    %2010 = vmatpush2.bf16.msra.mxu0 0
    %2011 = vmatprep.subr.bf16.mxu0 0
    %2012 = vmatpush2.bf16.msra.mxu0 0
    %2013 = vmatprep.mubr.bf16.mxu0 0
    %2014 = vmatmul.mubr.bf16.gmra.mxu0 %v1976
    %v2015 = vpop.f32.mrf.mxu0
    %v2016 = vadd.f32 0.0, %v2015
    %v2017 = vpop.f32.mrf.mxu0
    %v2018 = vpop.f32.mrf.mxu0
    %v2019 = vpop.f32.mrf.mxu0
    %2020 = vdwg.mxu0
    %v2022 = vsel %vm1317, %v1779, 0
    %v2025 = vsel %vm1793, %v1787, 0
    %2027 = vmatprep.subr.bf16.mxu0 0
    %2028 = vmatpush1.bf16.msra.mxu0 0
    %2029 = vmatprep.subr.bf16.mxu0 0
    %2030 = vmatpush1.bf16.msra.mxu0 0
    %2031 = vmatprep.subr.bf16.mxu0 0
    %2032 = vmatpush1.bf16.msra.mxu0 0
    %2033 = vmatprep.subr.bf16.mxu0 0
    %2034 = vmatpush1.bf16.msra.mxu0 0
    %2035 = vmatprep.subr.bf16.mxu0 0
    %2036 = vmatpush1.bf16.msra.mxu0 0
    %2037 = vmatprep.subr.bf16.mxu0 0
    %2038 = vmatpush1.bf16.msra.mxu0 0
    %2039 = vmatprep.subr.bf16.mxu0 0
    %2040 = vmatpush1.bf16.msra.mxu0 0
    %2041 = vmatprep.subr.bf16.mxu0 0
    %2042 = vmatpush1.bf16.msra.mxu0 %v2025
    %2043 = vmatprep.subr.bf16.mxu0 0
    %2044 = vmatpush2.bf16.msra.mxu0 0
    %2045 = vmatprep.subr.bf16.mxu0 0
    %2046 = vmatpush2.bf16.msra.mxu0 0
    %2047 = vmatprep.subr.bf16.mxu0 0
    %2048 = vmatpush2.bf16.msra.mxu0 0
    %2049 = vmatprep.subr.bf16.mxu0 0
    %2050 = vmatpush2.bf16.msra.mxu0 0
    %2051 = vmatprep.subr.bf16.mxu0 0
    %2052 = vmatpush2.bf16.msra.mxu0 0
    %2053 = vmatprep.subr.bf16.mxu0 0
    %2054 = vmatpush2.bf16.msra.mxu0 0
    %2055 = vmatprep.subr.bf16.mxu0 0
    %2056 = vmatpush2.bf16.msra.mxu0 0
    %2057 = vmatprep.subr.bf16.mxu0 0
    %2058 = vmatpush2.bf16.msra.mxu0 0
    %2059 = vmatprep.mubr.bf16.mxu0 0
    %2060 = vmatmul.mubr.bf16.gmra.mxu0 %v2022
    %v2061 = vpop.f32.mrf.mxu0
    %v2062 = vadd.f32 0.0, %v2061
    %v2063 = vpop.f32.mrf.mxu0
    %v2064 = vpop.f32.mrf.mxu0
    %v2065 = vpop.f32.mrf.mxu0
    %2066 = vdwg.mxu0
    %v2068 = vsel %vm1317, %v1780, 0
    %v2071 = vsel %vm1793, %v1788, 0
    %2073 = vmatprep.subr.bf16.mxu0 0
    %2074 = vmatpush1.bf16.msra.mxu0 0
    %2075 = vmatprep.subr.bf16.mxu0 0
    %2076 = vmatpush1.bf16.msra.mxu0 0
    %2077 = vmatprep.subr.bf16.mxu0 0
    %2078 = vmatpush1.bf16.msra.mxu0 0
    %2079 = vmatprep.subr.bf16.mxu0 0
    %2080 = vmatpush1.bf16.msra.mxu0 0
    %2081 = vmatprep.subr.bf16.mxu0 0
    %2082 = vmatpush1.bf16.msra.mxu0 0
    %2083 = vmatprep.subr.bf16.mxu0 0
    %2084 = vmatpush1.bf16.msra.mxu0 0
    %2085 = vmatprep.subr.bf16.mxu0 0
    %2086 = vmatpush1.bf16.msra.mxu0 0
    %2087 = vmatprep.subr.bf16.mxu0 0
    %2088 = vmatpush1.bf16.msra.mxu0 %v2071
    %2089 = vmatprep.subr.bf16.mxu0 0
    %2090 = vmatpush2.bf16.msra.mxu0 0
    %2091 = vmatprep.subr.bf16.mxu0 0
    %2092 = vmatpush2.bf16.msra.mxu0 0
    %2093 = vmatprep.subr.bf16.mxu0 0
    %2094 = vmatpush2.bf16.msra.mxu0 0
    %2095 = vmatprep.subr.bf16.mxu0 0
    %2096 = vmatpush2.bf16.msra.mxu0 0
    %2097 = vmatprep.subr.bf16.mxu0 0
    %2098 = vmatpush2.bf16.msra.mxu0 0
    %2099 = vmatprep.subr.bf16.mxu0 0
    %2100 = vmatpush2.bf16.msra.mxu0 0
    %2101 = vmatprep.subr.bf16.mxu0 0
    %2102 = vmatpush2.bf16.msra.mxu0 0
    %2103 = vmatprep.subr.bf16.mxu0 0
    %2104 = vmatpush2.bf16.msra.mxu0 0
    %2105 = vmatprep.mubr.bf16.mxu0 0
    %2106 = vmatmul.mubr.bf16.gmra.mxu0 %v2068
    %v2107 = vpop.f32.mrf.mxu0
    %v2108 = vadd.f32 0.0, %v2107
    %v2109 = vpop.f32.mrf.mxu0
    %v2110 = vpop.f32.mrf.mxu0
    %v2111 = vpop.f32.mrf.mxu0
    %2112 = vdwg.mxu0
    %v2114 = vsel %vm1317, %v1781, 0
    %v2117 = vsel %vm1793, %v1789, 0
    %2119 = vmatprep.subr.bf16.mxu0 0
    %2120 = vmatpush1.bf16.msra.mxu0 0
    %2121 = vmatprep.subr.bf16.mxu0 0
    %2122 = vmatpush1.bf16.msra.mxu0 0
    %2123 = vmatprep.subr.bf16.mxu0 0
    %2124 = vmatpush1.bf16.msra.mxu0 0
    %2125 = vmatprep.subr.bf16.mxu0 0
    %2126 = vmatpush1.bf16.msra.mxu0 0
    %2127 = vmatprep.subr.bf16.mxu0 0
    %2128 = vmatpush1.bf16.msra.mxu0 0
    %2129 = vmatprep.subr.bf16.mxu0 0
    %2130 = vmatpush1.bf16.msra.mxu0 0
    %2131 = vmatprep.subr.bf16.mxu0 0
    %2132 = vmatpush1.bf16.msra.mxu0 0
    %2133 = vmatprep.subr.bf16.mxu0 0
    %2134 = vmatpush1.bf16.msra.mxu0 %v2117
    %2135 = vmatprep.subr.bf16.mxu0 0
    %2136 = vmatpush2.bf16.msra.mxu0 0
    %2137 = vmatprep.subr.bf16.mxu0 0
    %2138 = vmatpush2.bf16.msra.mxu0 0
    %2139 = vmatprep.subr.bf16.mxu0 0
    %2140 = vmatpush2.bf16.msra.mxu0 0
    %2141 = vmatprep.subr.bf16.mxu0 0
    %2142 = vmatpush2.bf16.msra.mxu0 0
    %2143 = vmatprep.subr.bf16.mxu0 0
    %2144 = vmatpush2.bf16.msra.mxu0 0
    %2145 = vmatprep.subr.bf16.mxu0 0
    %2146 = vmatpush2.bf16.msra.mxu0 0
    %2147 = vmatprep.subr.bf16.mxu0 0
    %2148 = vmatpush2.bf16.msra.mxu0 0
    %2149 = vmatprep.subr.bf16.mxu0 0
    %2150 = vmatpush2.bf16.msra.mxu0 0
    %2151 = vmatprep.mubr.bf16.mxu0 0
    %2152 = vmatmul.mubr.bf16.gmra.mxu0 %v2114
    %v2153 = vpop.f32.mrf.mxu0
    %v2154 = vadd.f32 0.0, %v2153
    %v2155 = vpop.f32.mrf.mxu0
    %v2156 = vpop.f32.mrf.mxu0
    %v2157 = vpop.f32.mrf.mxu0
    %2158 = vdwg.mxu0
    %v2159 = vpack.c.bf16 %v1832, %v1832
    %v2160 = vpack.c.bf16 %v1878, %v1878
    %v2161 = vpack.c.bf16 %v1924, %v1924
    %v2162 = vpack.c.bf16 %v1970, %v1970
    %v2163 = vpack.c.bf16 %v2016, %v2016
    %v2164 = vpack.c.bf16 %v2062, %v2062
    %v2165 = vpack.c.bf16 %v2108, %v2108
    %v2166 = vpack.c.bf16 %v2154, %v2154
    %v2167 = vld [vmem:[%s9] sm:$0xf]
    %v2168 = vld [vmem:[%s9 + $0x4] sm:$0xf]
    %v2169 = vld [vmem:[%s9 + $0x8] sm:$0xf]
    %v2170 = vld [vmem:[%s9 + $0xc] sm:$0xf]
    %v2172 = vsel %vm1317, %v2159, 0
    %v2175 = vsel %vm1793, %v2167, 0
    %2177 = vmatprep.subr.bf16.mxu0 0
    %2178 = vmatpush1.bf16.msra.mxu0 0
    %2179 = vmatprep.subr.bf16.mxu0 0
    %2180 = vmatpush1.bf16.msra.mxu0 0
    %2181 = vmatprep.subr.bf16.mxu0 0
    %2182 = vmatpush1.bf16.msra.mxu0 0
    %2183 = vmatprep.subr.bf16.mxu0 0
    %2184 = vmatpush1.bf16.msra.mxu0 0
    %2185 = vmatprep.subr.bf16.mxu0 0
    %2186 = vmatpush1.bf16.msra.mxu0 0
    %2187 = vmatprep.subr.bf16.mxu0 0
    %2188 = vmatpush1.bf16.msra.mxu0 0
    %2189 = vmatprep.subr.bf16.mxu0 0
    %2190 = vmatpush1.bf16.msra.mxu0 0
    %2191 = vmatprep.subr.bf16.mxu0 0
    %2192 = vmatpush1.bf16.msra.mxu0 %v2175
    %2193 = vmatprep.subr.bf16.mxu0 0
    %2194 = vmatpush2.bf16.msra.mxu0 0
    %2195 = vmatprep.subr.bf16.mxu0 0
    %2196 = vmatpush2.bf16.msra.mxu0 0
    %2197 = vmatprep.subr.bf16.mxu0 0
    %2198 = vmatpush2.bf16.msra.mxu0 0
    %2199 = vmatprep.subr.bf16.mxu0 0
    %2200 = vmatpush2.bf16.msra.mxu0 0
    %2201 = vmatprep.subr.bf16.mxu0 0
    %2202 = vmatpush2.bf16.msra.mxu0 0
    %2203 = vmatprep.subr.bf16.mxu0 0
    %2204 = vmatpush2.bf16.msra.mxu0 0
    %2205 = vmatprep.subr.bf16.mxu0 0
    %2206 = vmatpush2.bf16.msra.mxu0 0
    %2207 = vmatprep.subr.bf16.mxu0 0
    %2208 = vmatpush2.bf16.msra.mxu0 0
    %2209 = vmatprep.mubr.bf16.mxu0 0
    %2210 = vmatmul.mubr.bf16.gmra.mxu0 %v2172
    %v2211 = vpop.f32.mrf.mxu0
    %v2212 = vadd.f32 0.0, %v2211
    %v2213 = vpop.f32.mrf.mxu0
    %v2214 = vpop.f32.mrf.mxu0
    %v2215 = vpop.f32.mrf.mxu0
    %2216 = vdwg.mxu0
    %v2218 = vsel %vm1317, %v2160, 0
    %v2221 = vsel %vm1793, %v2168, 0
    %2223 = vmatprep.subr.bf16.mxu0 0
    %2224 = vmatpush1.bf16.msra.mxu0 0
    %2225 = vmatprep.subr.bf16.mxu0 0
    %2226 = vmatpush1.bf16.msra.mxu0 0
    %2227 = vmatprep.subr.bf16.mxu0 0
    %2228 = vmatpush1.bf16.msra.mxu0 0
    %2229 = vmatprep.subr.bf16.mxu0 0
    %2230 = vmatpush1.bf16.msra.mxu0 0
    %2231 = vmatprep.subr.bf16.mxu0 0
    %2232 = vmatpush1.bf16.msra.mxu0 0
    %2233 = vmatprep.subr.bf16.mxu0 0
    %2234 = vmatpush1.bf16.msra.mxu0 0
    %2235 = vmatprep.subr.bf16.mxu0 0
    %2236 = vmatpush1.bf16.msra.mxu0 0
    %2237 = vmatprep.subr.bf16.mxu0 0
    %2238 = vmatpush1.bf16.msra.mxu0 %v2221
    %2239 = vmatprep.subr.bf16.mxu0 0
    %2240 = vmatpush2.bf16.msra.mxu0 0
    %2241 = vmatprep.subr.bf16.mxu0 0
    %2242 = vmatpush2.bf16.msra.mxu0 0
    %2243 = vmatprep.subr.bf16.mxu0 0
    %2244 = vmatpush2.bf16.msra.mxu0 0
    %2245 = vmatprep.subr.bf16.mxu0 0
    %2246 = vmatpush2.bf16.msra.mxu0 0
    %2247 = vmatprep.subr.bf16.mxu0 0
    %2248 = vmatpush2.bf16.msra.mxu0 0
    %2249 = vmatprep.subr.bf16.mxu0 0
    %2250 = vmatpush2.bf16.msra.mxu0 0
    %2251 = vmatprep.subr.bf16.mxu0 0
    %2252 = vmatpush2.bf16.msra.mxu0 0
    %2253 = vmatprep.subr.bf16.mxu0 0
    %2254 = vmatpush2.bf16.msra.mxu0 0
    %2255 = vmatprep.mubr.bf16.mxu0 0
    %2256 = vmatmul.mubr.bf16.gmra.mxu0 %v2218
    %v2257 = vpop.f32.mrf.mxu0
    %v2258 = vadd.f32 0.0, %v2257
    %v2259 = vpop.f32.mrf.mxu0
    %v2260 = vpop.f32.mrf.mxu0
    %v2261 = vpop.f32.mrf.mxu0
    %2262 = vdwg.mxu0
    %v2264 = vsel %vm1317, %v2161, 0
    %v2267 = vsel %vm1793, %v2169, 0
    %2269 = vmatprep.subr.bf16.mxu0 0
    %2270 = vmatpush1.bf16.msra.mxu0 0
    %2271 = vmatprep.subr.bf16.mxu0 0
    %2272 = vmatpush1.bf16.msra.mxu0 0
    %2273 = vmatprep.subr.bf16.mxu0 0
    %2274 = vmatpush1.bf16.msra.mxu0 0
    %2275 = vmatprep.subr.bf16.mxu0 0
    %2276 = vmatpush1.bf16.msra.mxu0 0
    %2277 = vmatprep.subr.bf16.mxu0 0
    %2278 = vmatpush1.bf16.msra.mxu0 0
    %2279 = vmatprep.subr.bf16.mxu0 0
    %2280 = vmatpush1.bf16.msra.mxu0 0
    %2281 = vmatprep.subr.bf16.mxu0 0
    %2282 = vmatpush1.bf16.msra.mxu0 0
    %2283 = vmatprep.subr.bf16.mxu0 0
    %2284 = vmatpush1.bf16.msra.mxu0 %v2267
    %2285 = vmatprep.subr.bf16.mxu0 0
    %2286 = vmatpush2.bf16.msra.mxu0 0
    %2287 = vmatprep.subr.bf16.mxu0 0
    %2288 = vmatpush2.bf16.msra.mxu0 0
    %2289 = vmatprep.subr.bf16.mxu0 0
    %2290 = vmatpush2.bf16.msra.mxu0 0
    %2291 = vmatprep.subr.bf16.mxu0 0
    %2292 = vmatpush2.bf16.msra.mxu0 0
    %2293 = vmatprep.subr.bf16.mxu0 0
    %2294 = vmatpush2.bf16.msra.mxu0 0
    %2295 = vmatprep.subr.bf16.mxu0 0
    %2296 = vmatpush2.bf16.msra.mxu0 0
    %2297 = vmatprep.subr.bf16.mxu0 0
    %2298 = vmatpush2.bf16.msra.mxu0 0
    %2299 = vmatprep.subr.bf16.mxu0 0
    %2300 = vmatpush2.bf16.msra.mxu0 0
    %2301 = vmatprep.mubr.bf16.mxu0 0
    %2302 = vmatmul.mubr.bf16.gmra.mxu0 %v2264
    %v2303 = vpop.f32.mrf.mxu0
    %v2304 = vadd.f32 0.0, %v2303
    %v2305 = vpop.f32.mrf.mxu0
    %v2306 = vpop.f32.mrf.mxu0
    %v2307 = vpop.f32.mrf.mxu0
    %2308 = vdwg.mxu0
    %v2310 = vsel %vm1317, %v2162, 0
    %v2313 = vsel %vm1793, %v2170, 0
    %2315 = vmatprep.subr.bf16.mxu0 0
    %2316 = vmatpush1.bf16.msra.mxu0 0
    %2317 = vmatprep.subr.bf16.mxu0 0
    %2318 = vmatpush1.bf16.msra.mxu0 0
    %2319 = vmatprep.subr.bf16.mxu0 0
    %2320 = vmatpush1.bf16.msra.mxu0 0
    %2321 = vmatprep.subr.bf16.mxu0 0
    %2322 = vmatpush1.bf16.msra.mxu0 0
    %2323 = vmatprep.subr.bf16.mxu0 0
    %2324 = vmatpush1.bf16.msra.mxu0 0
    %2325 = vmatprep.subr.bf16.mxu0 0
    %2326 = vmatpush1.bf16.msra.mxu0 0
    %2327 = vmatprep.subr.bf16.mxu0 0
    %2328 = vmatpush1.bf16.msra.mxu0 0
    %2329 = vmatprep.subr.bf16.mxu0 0
    %2330 = vmatpush1.bf16.msra.mxu0 %v2313
    %2331 = vmatprep.subr.bf16.mxu0 0
    %2332 = vmatpush2.bf16.msra.mxu0 0
    %2333 = vmatprep.subr.bf16.mxu0 0
    %2334 = vmatpush2.bf16.msra.mxu0 0
    %2335 = vmatprep.subr.bf16.mxu0 0
    %2336 = vmatpush2.bf16.msra.mxu0 0
    %2337 = vmatprep.subr.bf16.mxu0 0
    %2338 = vmatpush2.bf16.msra.mxu0 0
    %2339 = vmatprep.subr.bf16.mxu0 0
    %2340 = vmatpush2.bf16.msra.mxu0 0
    %2341 = vmatprep.subr.bf16.mxu0 0
    %2342 = vmatpush2.bf16.msra.mxu0 0
    %2343 = vmatprep.subr.bf16.mxu0 0
    %2344 = vmatpush2.bf16.msra.mxu0 0
    %2345 = vmatprep.subr.bf16.mxu0 0
    %2346 = vmatpush2.bf16.msra.mxu0 0
    %2347 = vmatprep.mubr.bf16.mxu0 0
    %2348 = vmatmul.mubr.bf16.gmra.mxu0 %v2310
    %v2349 = vpop.f32.mrf.mxu0
    %v2350 = vadd.f32 0.0, %v2349
    %v2351 = vpop.f32.mrf.mxu0
    %v2352 = vpop.f32.mrf.mxu0
    %v2353 = vpop.f32.mrf.mxu0
    %2354 = vdwg.mxu0
    %v2356 = vsel %vm1317, %v2163, 0
    %2358 = vmatprep.subr.bf16.mxu0 0
    %2359 = vmatpush1.bf16.msra.mxu0 0
    %2360 = vmatprep.subr.bf16.mxu0 0
    %2361 = vmatpush1.bf16.msra.mxu0 0
    %2362 = vmatprep.subr.bf16.mxu0 0
    %2363 = vmatpush1.bf16.msra.mxu0 0
    %2364 = vmatprep.subr.bf16.mxu0 0
    %2365 = vmatpush1.bf16.msra.mxu0 0
    %2366 = vmatprep.subr.bf16.mxu0 0
    %2367 = vmatpush1.bf16.msra.mxu0 0
    %2368 = vmatprep.subr.bf16.mxu0 0
    %2369 = vmatpush1.bf16.msra.mxu0 0
    %2370 = vmatprep.subr.bf16.mxu0 0
    %2371 = vmatpush1.bf16.msra.mxu0 0
    %2372 = vmatprep.subr.bf16.mxu0 0
    %2373 = vmatpush1.bf16.msra.mxu0 %v2175
    %2374 = vmatprep.subr.bf16.mxu0 0
    %2375 = vmatpush2.bf16.msra.mxu0 0
    %2376 = vmatprep.subr.bf16.mxu0 0
    %2377 = vmatpush2.bf16.msra.mxu0 0
    %2378 = vmatprep.subr.bf16.mxu0 0
    %2379 = vmatpush2.bf16.msra.mxu0 0
    %2380 = vmatprep.subr.bf16.mxu0 0
    %2381 = vmatpush2.bf16.msra.mxu0 0
    %2382 = vmatprep.subr.bf16.mxu0 0
    %2383 = vmatpush2.bf16.msra.mxu0 0
    %2384 = vmatprep.subr.bf16.mxu0 0
    %2385 = vmatpush2.bf16.msra.mxu0 0
    %2386 = vmatprep.subr.bf16.mxu0 0
    %2387 = vmatpush2.bf16.msra.mxu0 0
    %2388 = vmatprep.subr.bf16.mxu0 0
    %2389 = vmatpush2.bf16.msra.mxu0 0
    %2390 = vmatprep.mubr.bf16.mxu0 0
    %2391 = vmatmul.mubr.bf16.gmra.mxu0 %v2356
    %v2392 = vpop.f32.mrf.mxu0
    %v2393 = vadd.f32 0.0, %v2392
    %v2394 = vpop.f32.mrf.mxu0
    %v2395 = vpop.f32.mrf.mxu0
    %v2396 = vpop.f32.mrf.mxu0
    %2397 = vdwg.mxu0
    %v2399 = vsel %vm1317, %v2164, 0
    %2401 = vmatprep.subr.bf16.mxu0 0
    %2402 = vmatpush1.bf16.msra.mxu0 0
    %2403 = vmatprep.subr.bf16.mxu0 0
    %2404 = vmatpush1.bf16.msra.mxu0 0
    %2405 = vmatprep.subr.bf16.mxu0 0
    %2406 = vmatpush1.bf16.msra.mxu0 0
    %2407 = vmatprep.subr.bf16.mxu0 0
    %2408 = vmatpush1.bf16.msra.mxu0 0
    %2409 = vmatprep.subr.bf16.mxu0 0
    %2410 = vmatpush1.bf16.msra.mxu0 0
    %2411 = vmatprep.subr.bf16.mxu0 0
    %2412 = vmatpush1.bf16.msra.mxu0 0
    %2413 = vmatprep.subr.bf16.mxu0 0
    %2414 = vmatpush1.bf16.msra.mxu0 0
    %2415 = vmatprep.subr.bf16.mxu0 0
    %2416 = vmatpush1.bf16.msra.mxu0 %v2221
    %2417 = vmatprep.subr.bf16.mxu0 0
    %2418 = vmatpush2.bf16.msra.mxu0 0
    %2419 = vmatprep.subr.bf16.mxu0 0
    %2420 = vmatpush2.bf16.msra.mxu0 0
    %2421 = vmatprep.subr.bf16.mxu0 0
    %2422 = vmatpush2.bf16.msra.mxu0 0
    %2423 = vmatprep.subr.bf16.mxu0 0
    %2424 = vmatpush2.bf16.msra.mxu0 0
    %2425 = vmatprep.subr.bf16.mxu0 0
    %2426 = vmatpush2.bf16.msra.mxu0 0
    %2427 = vmatprep.subr.bf16.mxu0 0
    %2428 = vmatpush2.bf16.msra.mxu0 0
    %2429 = vmatprep.subr.bf16.mxu0 0
    %2430 = vmatpush2.bf16.msra.mxu0 0
    %2431 = vmatprep.subr.bf16.mxu0 0
    %2432 = vmatpush2.bf16.msra.mxu0 0
    %2433 = vmatprep.mubr.bf16.mxu0 0
    %2434 = vmatmul.mubr.bf16.gmra.mxu0 %v2399
    %v2435 = vpop.f32.mrf.mxu0
    %v2436 = vadd.f32 0.0, %v2435
    %v2437 = vpop.f32.mrf.mxu0
    %v2438 = vpop.f32.mrf.mxu0
    %v2439 = vpop.f32.mrf.mxu0
    %2440 = vdwg.mxu0
    %v2442 = vsel %vm1317, %v2165, 0
    %2444 = vmatprep.subr.bf16.mxu0 0
    %2445 = vmatpush1.bf16.msra.mxu0 0
    %2446 = vmatprep.subr.bf16.mxu0 0
    %2447 = vmatpush1.bf16.msra.mxu0 0
    %2448 = vmatprep.subr.bf16.mxu0 0
    %2449 = vmatpush1.bf16.msra.mxu0 0
    %2450 = vmatprep.subr.bf16.mxu0 0
    %2451 = vmatpush1.bf16.msra.mxu0 0
    %2452 = vmatprep.subr.bf16.mxu0 0
    %2453 = vmatpush1.bf16.msra.mxu0 0
    %2454 = vmatprep.subr.bf16.mxu0 0
    %2455 = vmatpush1.bf16.msra.mxu0 0
    %2456 = vmatprep.subr.bf16.mxu0 0
    %2457 = vmatpush1.bf16.msra.mxu0 0
    %2458 = vmatprep.subr.bf16.mxu0 0
    %2459 = vmatpush1.bf16.msra.mxu0 %v2267
    %2460 = vmatprep.subr.bf16.mxu0 0
    %2461 = vmatpush2.bf16.msra.mxu0 0
    %2462 = vmatprep.subr.bf16.mxu0 0
    %2463 = vmatpush2.bf16.msra.mxu0 0
    %2464 = vmatprep.subr.bf16.mxu0 0
    %2465 = vmatpush2.bf16.msra.mxu0 0
    %2466 = vmatprep.subr.bf16.mxu0 0
    %2467 = vmatpush2.bf16.msra.mxu0 0
    %2468 = vmatprep.subr.bf16.mxu0 0
    %2469 = vmatpush2.bf16.msra.mxu0 0
    %2470 = vmatprep.subr.bf16.mxu0 0
    %2471 = vmatpush2.bf16.msra.mxu0 0
    %2472 = vmatprep.subr.bf16.mxu0 0
    %2473 = vmatpush2.bf16.msra.mxu0 0
    %2474 = vmatprep.subr.bf16.mxu0 0
    %2475 = vmatpush2.bf16.msra.mxu0 0
    %2476 = vmatprep.mubr.bf16.mxu0 0
    %2477 = vmatmul.mubr.bf16.gmra.mxu0 %v2442
    %v2478 = vpop.f32.mrf.mxu0
    %v2479 = vadd.f32 0.0, %v2478
    %v2480 = vpop.f32.mrf.mxu0
    %v2481 = vpop.f32.mrf.mxu0
    %v2482 = vpop.f32.mrf.mxu0
    %2483 = vdwg.mxu0
    %v2485 = vsel %vm1317, %v2166, 0
    %2487 = vmatprep.subr.bf16.mxu0 0
    %2488 = vmatpush1.bf16.msra.mxu0 0
    %2489 = vmatprep.subr.bf16.mxu0 0
    %2490 = vmatpush1.bf16.msra.mxu0 0
    %2491 = vmatprep.subr.bf16.mxu0 0
    %2492 = vmatpush1.bf16.msra.mxu0 0
    %2493 = vmatprep.subr.bf16.mxu0 0
    %2494 = vmatpush1.bf16.msra.mxu0 0
    %2495 = vmatprep.subr.bf16.mxu0 0
    %2496 = vmatpush1.bf16.msra.mxu0 0
    %2497 = vmatprep.subr.bf16.mxu0 0
    %2498 = vmatpush1.bf16.msra.mxu0 0
    %2499 = vmatprep.subr.bf16.mxu0 0
    %2500 = vmatpush1.bf16.msra.mxu0 0
    %2501 = vmatprep.subr.bf16.mxu0 0
    %2502 = vmatpush1.bf16.msra.mxu0 %v2313
    %2503 = vmatprep.subr.bf16.mxu0 0
    %2504 = vmatpush2.bf16.msra.mxu0 0
    %2505 = vmatprep.subr.bf16.mxu0 0
    %2506 = vmatpush2.bf16.msra.mxu0 0
    %2507 = vmatprep.subr.bf16.mxu0 0
    %2508 = vmatpush2.bf16.msra.mxu0 0
    %2509 = vmatprep.subr.bf16.mxu0 0
    %2510 = vmatpush2.bf16.msra.mxu0 0
    %2511 = vmatprep.subr.bf16.mxu0 0
    %2512 = vmatpush2.bf16.msra.mxu0 0
    %2513 = vmatprep.subr.bf16.mxu0 0
    %2514 = vmatpush2.bf16.msra.mxu0 0
    %2515 = vmatprep.subr.bf16.mxu0 0
    %2516 = vmatpush2.bf16.msra.mxu0 0
    %2517 = vmatprep.subr.bf16.mxu0 0
    %2518 = vmatpush2.bf16.msra.mxu0 0
    %2519 = vmatprep.mubr.bf16.mxu0 0
    %2520 = vmatmul.mubr.bf16.gmra.mxu0 %v2485
    %v2521 = vpop.f32.mrf.mxu0
    %v2522 = vadd.f32 0.0, %v2521
    %v2523 = vpop.f32.mrf.mxu0
    %v2524 = vpop.f32.mrf.mxu0
    %v2525 = vpop.f32.mrf.mxu0
    %2526 = vdwg.mxu0
    %v2527 = vsel %vm98, %v2212, 0.0
    %v2528 = vsel %vm98, %v2258, 0.0
    %v2529 = vadd.f32 %v2527, %v2528
    %v2530 = vsel %vm98, %v2304, 0.0
    %v2531 = vadd.f32 %v2529, %v2530
    %v2532 = vsel %vm98, %v2350, 0.0
    %v2533 = vadd.f32 %v2531, %v2532
    %v2534 = vsel %vm98, %v2393, 0.0
    %v2535 = vsel %vm98, %v2436, 0.0
    %v2536 = vadd.f32 %v2534, %v2535
    %v2537 = vsel %vm98, %v2479, 0.0
    %v2538 = vadd.f32 %v2536, %v2537
    %v2539 = vsel %vm98, %v2522, 0.0
    %v2540 = vadd.f32 %v2538, %v2539
    %v2541 = vld [vmem:[%s10] sm:$0x1]
    %v2543 = vlaneseq
    %v2544 = vshrl.u32 %v2543, 7
    %v2545 = vsub.s32 0, %v2544
    %v2546 = vrot.slane %v2541, %v2545
    %v2548 = vadd.f32 %v2533, %v2546
    %v2549 = vadd.f32 %v2540, %v2546
    %2550 = vst.msk [vmem:[#allocation2] sm:$0xff] %vm98, %v2548
    %2551 = vst.msk [vmem:[#allocation2 + $0x8] sm:$0xff] %vm98, %v2549
    // Predicated region
    $region46: #{tpu_custom_call.1} parent=1 // pred_check
      _
    $region47: #{tpu_custom_call.1} parent=1 // pred_check_branch
      %2553 = sbr.rel (0) target = $region49
    $region48: #{tpu_custom_call.1} parent=1 // pred_region
      %s2555 = ssub.s32 256, 256
      %2556 = vsyncadd [#allocation3], %s2555
      %s2557 = sshll.u32 [#allocation2], 4
      %s2558 = int_to_ptr.vmem [resolvable:$true] %s2557
      %2563 = dma.vmem_to_hbm [thread:$0]  %s2558, 256, %s11, [#allocation3], 128, 128, 8
    $region49: #{tpu_custom_call.1} parent=1 // pred_fallthru
      _
    // Predicated region
    $region50: #{tpu_custom_call.1} parent=1 // pred_check
      _
    $region51: #{tpu_custom_call.1} parent=1 // pred_check_branch
      %2565 = sbr.rel (0) target = $region53
    $region52: #{tpu_custom_call.1} parent=1 // pred_region
      %2566 = dma.done [#allocation3], 256
    $region53: #{tpu_custom_call.1} parent=1 // pred_fallthru
      _
    %2567 = vsyncpa [#allocation3], 1

</llo_original>
